<compile_context>
chip_gen: v7x
topology: tpu7x:2x2x1
jax: 0.10.0
libtpu: 0.0.40
codegen_flags: <defaults>
</compile_context>

<pallas_src>
import numpy as np
import jax
import jax.numpy as jnp
from jax import lax
from jax.experimental import pallas as pl
from jax.experimental.pallas import tpu as pltpu

INPUT_SIZE = 8
OUTPUT_SIZE = 8
CONTROLLER_SIZE = 100
N = 128          # memory slots (addressing axis, lane-dense in-kernel)
M = 20           # memory word size
EPS = 1e-8

H = CONTROLLER_SIZE
HPAD = 128                     # padded lanes per LSTM gate block (i|f|g|o)
GATES = 4 * HPAD               # 512 fused-gate lanes
HB = 128                       # padded lanes per head block
HEADS_PAD = 5 * HB             # 640 = [fc | key | beta | erase | add]
_FC, _KEY, _BETA, _ERASE, _ADD = 0, HB, 2 * HB, 3 * HB, 4 * HB


def _sigmoid(x):
    # single-EUP sigmoid (tanh form); equals 1/(1+exp(-x)) to ~1 ulp.
    return 0.5 * (jnp.tanh(0.5 * x) + 1.0)


def _softplus(x):
    return jnp.maximum(x, 0.0) + jnp.log(1.0 + jnp.exp(-jnp.abs(x)))


def _ntm_step(gates_x_t, read, h, c, memT, eye_m,
              w_ih_r_ref, w_hh_ref, w_heads_ref, b_heads_ref):
    """One NTM timestep.
    gates_x_t (1,512)  precomputed x@Wx + bias (128-aligned gate blocks)
    read      (1,20)   previous read vector
    h, c      (1,128)  LSTM state (lanes 100:128 are exact zeros)
    memT      (20,128) memory, transposed so the N addressing axis is lane-dense
    eye_m     (20,20)  constant identity used as an MXU (1,20)->(20,1) transpose
    """
    f32 = jnp.float32

    # ---- LSTMCell: recurrent gate terms (x-projection already hoisted) ----
    gates = (gates_x_t
             + jnp.dot(read, w_ih_r_ref[...], preferred_element_type=f32)
             + jnp.dot(h, w_hh_ref[...], preferred_element_type=f32))      # (1,512)
    i_g = _sigmoid(gates[:, 0 * HPAD:1 * HPAD])
    f_g = _sigmoid(gates[:, 1 * HPAD:2 * HPAD])
    g_g = jnp.tanh(gates[:, 2 * HPAD:3 * HPAD])
    o_g = _sigmoid(gates[:, 3 * HPAD:4 * HPAD])
    c_new = f_g * c + i_g * g_g                      # pad lanes stay exactly 0
    h_new = o_g * jnp.tanh(c_new)                    # pad lanes stay exactly 0

    # ---- all five heads with a single matmul (128-aligned slices) ----
    heads = (jnp.dot(h_new, w_heads_ref[...], preferred_element_type=f32)
             + b_heads_ref[...])                                            # (1,640)
    ctrl = _sigmoid(heads[:, _FC:_FC + OUTPUT_SIZE])                        # (1,8)
    key = jnp.tanh(heads[:, _KEY:_KEY + M])                                 # (1,20)
    beta = _softplus(heads[:, _BETA:_BETA + 1]) + EPS                       # (1,1)
    erase = _sigmoid(heads[:, _ERASE:_ERASE + M])                           # (1,20)
    add = jnp.tanh(heads[:, _ADD:_ADD + M])                                 # (1,20)

    # ---- content addressing: everything lane-dense along N ----
    k = key * lax.rsqrt(jnp.sum(key * key, axis=-1, keepdims=True) + EPS * EPS)
    inv_norm = lax.rsqrt(jnp.sum(memT * memT, axis=0, keepdims=True) + EPS * EPS)   # (1,128)
    sim = jnp.dot(k, memT, preferred_element_type=f32) * inv_norm                   # (1,128)
    scores = beta * sim
    mx = jnp.max(scores, axis=-1, keepdims=True)
    e = jnp.exp(scores - mx)
    inv = pl.reciprocal(jnp.sum(e, axis=-1, keepdims=True), approx=True)
    w_row = e * inv                                                                  # (1,128)

    # ---- write (erase/add columns via tiny MXU transpose), then read ----
    dn_t = (((1,), (1,)), ((), ()))        # contract last dims: eye (20,20) x (1,20)^T
    erase_col = lax.dot_general(eye_m, erase, dn_t, preferred_element_type=f32)     # (20,1)
    add_col = lax.dot_general(eye_m, add, dn_t, preferred_element_type=f32)          # (20,1)
    memT_new = memT * (1.0 - erase_col * w_row) + add_col * w_row                    # (20,128)

    dn_r = (((1,), (1,)), ((), ()))        # contract N
    read_new = lax.dot_general(w_row, memT_new, dn_r, preferred_element_type=f32)    # (1,20)

    return ctrl, read_new, h_new, c_new, w_row, memT_new


def ntm_seq_kernel(x_seq_ref, read_ref, h_ref, c_ref, memT_ref,
                   w_ih_x_ref, w_ih_r_ref, w_hh_ref, b_lstm_ref,
                   w_heads_ref, b_heads_ref,
                   out_seq_ref, h_out_ref, c_out_ref, read_out_ref,
                   w_out_ref, memT_out_ref):
    """T NTM timesteps in one launch.  The x-projection (and LSTM bias) is
    hoisted out of the recurrence; weights stream from VMEM inside the loop."""
    f32 = jnp.float32

    # hoisted input projection + bias for all T timesteps: one (T,8)x(8,512) matmul
    gates_x = (jnp.dot(x_seq_ref[...], w_ih_x_ref[...], preferred_element_type=f32)
               + b_lstm_ref[...])                                           # (T, 512)

    # constant identity: MXU-based (1,20) -> (20,1) relayout for erase/add columns
    row_ids = lax.broadcasted_iota(jnp.int32, (M, M), 0)
    col_ids = lax.broadcasted_iota(jnp.int32, (M, M), 1)
    eye_m = (row_ids == col_ids).astype(f32)                                # (20,20)

    read = read_ref[...]        # (1,20)
    h = h_ref[...]              # (1,128)
    c = c_ref[...]              # (1,128)
    memT = memT_ref[...]        # (20,128)
    w_row = jnp.zeros((1, N), f32)

    T = x_seq_ref.shape[0]
    # T is small -> static unroll; carried state is only ~10 vregs.
    # TODO(synk): switch to lax.fori_loop(..., unroll=2-4) for long sequences.
    for t in range(T):
        ctrl, read, h, c, w_row, memT = _ntm_step(
            gates_x[t:t + 1, :], read, h, c, memT, eye_m,
            w_ih_r_ref, w_hh_ref, w_heads_ref, b_heads_ref)
        out_seq_ref[pl.ds(t, 1), :] = ctrl

    h_out_ref[...] = h
    c_out_ref[...] = c
    read_out_ref[...] = read
    w_out_ref[...] = w_row
    memT_out_ref[...] = memT


_VMEM = pl.BlockSpec(memory_space=pltpu.MemorySpace.VMEM)


def _ntm_call(x_seq, read_vector, h, c, memory, kp):
    """Core call: T timesteps fused into a single pallas_call."""
    T = x_seq.shape[0]
    zpad = jnp.zeros((HPAD - H,), jnp.float32)
    read0 = read_vector[None, :]                                  # (1,20)
    h0 = jnp.concatenate([h, zpad])[None, :]                      # (1,128), pad = 0
    c0 = jnp.concatenate([c, zpad])[None, :]                      # (1,128), pad = 0
    memT = memory.T                                               # (20,128) lane-dense N

    out_shape = (
        jax.ShapeDtypeStruct((T, OUTPUT_SIZE), jnp.float32),      # sigmoid(controller out)
        jax.ShapeDtypeStruct((1, HPAD), jnp.float32),             # h (padded)
        jax.ShapeDtypeStruct((1, HPAD), jnp.float32),             # c (padded)
        jax.ShapeDtypeStruct((1, M), jnp.float32),                # new read vector
        jax.ShapeDtypeStruct((1, N), jnp.float32),                # read weights (lane dense)
        jax.ShapeDtypeStruct((M, N), jnp.float32),                # updated memory (transposed)
    )
    out_seq, h_out, c_out, read_out, w_out, memT_out = pl.pallas_call(
        ntm_seq_kernel,
        out_shape=out_shape,
        in_specs=[_VMEM] * 11,
        out_specs=tuple([_VMEM] * 6),
        input_output_aliases={4: 5},       # memory buffer updated in place
    )(x_seq, read0, h0, c0, memT,
      kp["w_ih_x"], kp["w_ih_r"], kp["w_hh"], kp["b_lstm"],
      kp["w_heads"], kp["b_heads"])

    return (out_seq, (h_out[0, :H], c_out[0, :H]), w_out[0],
            memT_out.T, read_out[0])


ntm_forward_seq = jax.jit(_ntm_call)


@jax.jit
def ntm_forward(x, read_vector, h, c, memory, kp):
    """Single NTM step — mirrors NTM.forward(x, prev_state) of the PyTorch module."""
    out_seq, state, w, mem_new, read_new = _ntm_call(
        x[None, :], read_vector, h, c, memory, kp)
    return out_seq[0], state, w, mem_new, read_new


# --------------------------- parameters ------------------------------------

def init_params(key):
    """PyTorch-style uniform init in the natural (unpadded) layout.
    Gate order inside 4H blocks is [i | f | g | o]; LSTM bias is b_ih + b_hh."""
    ks = jax.random.split(key, 14)

    def u(k, shape, stdv):
        return jax.random.uniform(k, shape, jnp.float32, minval=-stdv, maxval=stdv)

    s = 1.0 / np.sqrt(H)
    return dict(
        w_ih_x=u(ks[0], (INPUT_SIZE, 4 * H), s),
        w_ih_r=u(ks[1], (M, 4 * H), s),
        w_hh=u(ks[2], (H, 4 * H), s),
        b_lstm=u(ks[3], (1, 4 * H), 2.0 * s),          # combined b_ih + b_hh
        w_fc=u(ks[4], (H, OUTPUT_SIZE), s),   b_fc=u(ks[5], (1, OUTPUT_SIZE), s),
        w_key=u(ks[6], (H, M), s),            b_key=u(ks[7], (1, M), s),
        w_beta=u(ks[8], (H, 1), s),           b_beta=u(ks[9], (1, 1), s),
        w_erase=u(ks[10], (H, M), s),         b_erase=u(ks[11], (1, M), s),
        w_add=u(ks[12], (H, M), s),           b_add=u(ks[13], (1, M), s),
    )


def _pad_gate_cols(w):
    """(K, 4H) -> (K, 512): gate g goes to lanes [g*128, g*128+H); pad lanes are 0."""
    K = w.shape[0]
    out = jnp.zeros((K, GATES), jnp.float32)
    for g in range(4):
        out = out.at[:, g * HPAD:g * HPAD + H].set(w[:, g * H:(g + 1) * H])
    return out


def pack_params(p):
    """Pack natural params into the padded / fused kernel layout."""
    w_ih_x = _pad_gate_cols(p["w_ih_x"])                                  # (8, 512)
    w_ih_r = _pad_gate_cols(p["w_ih_r"])                                  # (20, 512)
    w_hh = jnp.zeros((HPAD, GATES), jnp.float32).at[:H].set(
        _pad_gate_cols(p["w_hh"]))                                        # (128, 512)
    b_lstm = _pad_gate_cols(p["b_lstm"])                                  # (1, 512)

    w_heads = jnp.zeros((HPAD, HEADS_PAD), jnp.float32)
    b_heads = jnp.zeros((1, HEADS_PAD), jnp.float32)
    for off, wk, bk in ((_FC, "w_fc", "b_fc"), (_KEY, "w_key", "b_key"),
                        (_BETA, "w_beta", "b_beta"), (_ERASE, "w_erase", "b_erase"),
                        (_ADD, "w_add", "b_add")):
        n = p[wk].shape[1]
        w_heads = w_heads.at[:H, off:off + n].set(p[wk])
        b_heads = b_heads.at[:, off:off + n].set(p[bk])
    return dict(w_ih_x=w_ih_x, w_ih_r=w_ih_r, w_hh=w_hh, b_lstm=b_lstm,
                w_heads=w_heads, b_heads=b_heads)


# --------------------------- pure-JAX reference -----------------------------

def ntm_forward_ref(x, read_vector, h, c, memory, p):
    """Mirrors the PyTorch forward exactly (divide-form norms, jax.nn activations)."""
    xr = jnp.concatenate([x, read_vector])[None, :]                       # (1, 28)
    w_ih = jnp.concatenate([p["w_ih_x"], p["w_ih_r"]], axis=0)            # (28, 4H)
    gates = xr @ w_ih + h[None, :] @ p["w_hh"] + p["b_lstm"]
    i = jax.nn.sigmoid(gates[:, :H])
    f = jax.nn.sigmoid(gates[:, H:2 * H])
    g = jnp.tanh(gates[:, 2 * H:3 * H])
    o = jax.nn.sigmoid(gates[:, 3 * H:])
    c_new = f * c[None, :] + i * g
    h_new = o * jnp.tanh(c_new)

    out = jax.nn.sigmoid(h_new @ p["w_fc"] + p["b_fc"])
    key = jnp.tanh(h_new @ p["w_key"] + p["b_key"])
    beta = jax.nn.softplus(h_new @ p["w_beta"] + p["b_beta"]) + EPS
    erase = jax.nn.sigmoid(h_new @ p["w_erase"] + p["b_erase"])
    add = jnp.tanh(h_new @ p["w_add"] + p["b_add"])

    k = key / (jnp.linalg.norm(key) + EPS)
    mem_norm = memory / (jnp.linalg.norm(memory, axis=1, keepdims=True) + EPS)
    sim = mem_norm @ k[0]                                                 # (N,)
    w = jax.nn.softmax(beta[0, 0] * sim)
    mem_new = memory * (1.0 - w[:, None] * erase) + w[:, None] * add
    read_new = w @ mem_new
    return out[0], (h_new[0], c_new[0]), w, mem_new, read_new


# --------------------------- test ------------------------------------------

if __name__ == "__main__":
    root = jax.random.PRNGKey(0)
    k_params, k_x, k_h, k_c, k_seq = jax.random.split(root, 5)
    params = init_params(k_params)          # natural layout (reference)
    kparams = pack_params(params)           # padded / fused kernel layout

    x = jax.random.normal(k_x, (INPUT_SIZE,), jnp.float32)
    h0 = 0.1 * jax.random.normal(k_h, (CONTROLLER_SIZE,), dtype=jnp.float32)
    c0 = 0.1 * jax.random.normal(k_c, (CONTROLLER_SIZE,), dtype=jnp.float32)
    memory0 = jnp.zeros((N, M), jnp.float32)      # register_buffer('memory', zeros)
    read0 = jnp.zeros((M,), jnp.float32)          # self.read_vector init

    # ---- single step (matches NTM.forward) ----
    out, (h1, c1), w1, mem1, read1 = ntm_forward(x, read0, h0, c0, memory0, kparams)
    jax.block_until_ready((out, h1, c1, w1, mem1, read1))

    r_out, (r_h, r_c), r_w, r_mem, r_read = ntm_forward_ref(x, read0, h0, c0, memory0, params)
    # tolerance covers the approximate EUP reciprocal used in the softmax denominator
    for got, ref in ((out, r_out), (h1, r_h), (c1, r_c), (w1, r_w), (mem1, r_mem), (read1, r_read)):
        np.testing.assert_allclose(np.asarray(got), np.asarray(ref), rtol=5e-3, atol=2e-5)

    # ---- T timesteps fused into a single kernel launch ----
    T = 8
    x_seq = jax.random.normal(k_seq, (T, INPUT_SIZE), jnp.float32)
    out_seq, (hT, cT), wT, memS, readT = ntm_forward_seq(x_seq, read0, h0, c0, memory0, kparams)
    jax.block_until_ready((out_seq, hT, cT, wT, memS, readT))

    rh_, rc_, rmem, rread = h0, c0, memory0, read0
    r_outs, r_w_last = [], None
    for t in range(T):
        r_out_t, (rh_, rc_), r_w_last, rmem, rread = ntm_forward_ref(
            x_seq[t], rread, rh_, rc_, rmem, params)
        r_outs.append(r_out_t)
    r_out_seq = jnp.stack(r_outs)
    for got, ref in ((out_seq, r_out_seq), (hT, rh_), (cT, rc_),
                     (wT, r_w_last), (memS, rmem), (readT, rread)):
        np.testing.assert_allclose(np.asarray(got), np.asarray(ref), rtol=1e-2, atol=1e-4)

    print("KERNEL_OK")
</pallas_src>

<mosaic_0001>
module attributes {stable_mosaic.version = 11 : i64} {
  func.func @ntm_seq_kernel(%arg0: memref<1x8xf32, #tpu.memory_space<vmem>>, %arg1: memref<1x20xf32, #tpu.memory_space<vmem>>, %arg2: memref<1x128xf32, #tpu.memory_space<vmem>>, %arg3: memref<1x128xf32, #tpu.memory_space<vmem>>, %arg4: memref<20x128xf32, #tpu.memory_space<vmem>>, %arg5: memref<8x512xf32, #tpu.memory_space<vmem>>, %arg6: memref<20x512xf32, #tpu.memory_space<vmem>>, %arg7: memref<128x512xf32, #tpu.memory_space<vmem>>, %arg8: memref<1x512xf32, #tpu.memory_space<vmem>>, %arg9: memref<128x640xf32, #tpu.memory_space<vmem>>, %arg10: memref<1x640xf32, #tpu.memory_space<vmem>>, %arg11: memref<1x8xf32, #tpu.memory_space<vmem>>, %arg12: memref<1x128xf32, #tpu.memory_space<vmem>>, %arg13: memref<1x128xf32, #tpu.memory_space<vmem>>, %arg14: memref<1x20xf32, #tpu.memory_space<vmem>>, %arg15: memref<1x128xf32, #tpu.memory_space<vmem>>, %arg16: memref<20x128xf32, #tpu.memory_space<vmem>>) attributes {dimension_semantics = [], scalar_prefetch = 0 : i64, scratch_operands = 0 : i64, tpu.core_type = #tpu.core_type<tc>} {
    %c0 = arith.constant 0 : index
    %c0_0 = arith.constant 0 : index
    %0 = vector.load %arg0[%c0, %c0_0] : memref<1x8xf32, #tpu.memory_space<vmem>>, vector<1x8xf32>
    %c0_1 = arith.constant 0 : index
    %c0_2 = arith.constant 0 : index
    %1 = vector.load %arg5[%c0_1, %c0_2] : memref<8x512xf32, #tpu.memory_space<vmem>>, vector<8x512xf32>
    %cst = arith.constant dense<0.000000e+00> : vector<1x512xf32>
    %2 = tpu.matmul %0, %1, %cst {dimension_numbers = #tpu.dot_dimension_numbers<[1], [0], [0], [1], [0, 0, 1, 1], [], []>} : vector<1x8xf32>, vector<8x512xf32>, vector<1x512xf32> -> vector<1x512xf32>
    %c0_3 = arith.constant 0 : index
    %c0_4 = arith.constant 0 : index
    %3 = vector.load %arg8[%c0_3, %c0_4] : memref<1x512xf32, #tpu.memory_space<vmem>>, vector<1x512xf32>
    %4 = arith.addf %2, %3 : vector<1x512xf32>
    %5 = tpu.iota {dimensions = array<i32: 0>} : vector<20x20xi32>
    %6 = tpu.iota {dimensions = array<i32: 1>} : vector<20x20xi32>
    %7 = arith.cmpi eq, %5, %6 : vector<20x20xi32>
    %8 = arith.extui %7 : vector<20x20xi1> to vector<20x20xi32>
    %9 = arith.sitofp %8 : vector<20x20xi32> to vector<20x20xf32>
    %c0_5 = arith.constant 0 : index
    %c0_6 = arith.constant 0 : index
    %10 = vector.load %arg1[%c0_5, %c0_6] : memref<1x20xf32, #tpu.memory_space<vmem>>, vector<1x20xf32>
    %c0_7 = arith.constant 0 : index
    %c0_8 = arith.constant 0 : index
    %11 = vector.load %arg2[%c0_7, %c0_8] : memref<1x128xf32, #tpu.memory_space<vmem>>, vector<1x128xf32>
    %c0_9 = arith.constant 0 : index
    %c0_10 = arith.constant 0 : index
    %12 = vector.load %arg3[%c0_9, %c0_10] : memref<1x128xf32, #tpu.memory_space<vmem>>, vector<1x128xf32>
    %c0_11 = arith.constant 0 : index
    %c0_12 = arith.constant 0 : index
    %13 = vector.load %arg4[%c0_11, %c0_12] : memref<20x128xf32, #tpu.memory_space<vmem>>, vector<20x128xf32>
    %c0_13 = arith.constant 0 : index
    %c0_14 = arith.constant 0 : index
    %14 = vector.load %arg6[%c0_13, %c0_14] : memref<20x512xf32, #tpu.memory_space<vmem>>, vector<20x512xf32>
    %cst_15 = arith.constant dense<0.000000e+00> : vector<1x512xf32>
    %15 = tpu.matmul %10, %14, %cst_15 {dimension_numbers = #tpu.dot_dimension_numbers<[1], [0], [0], [1], [0, 0, 1, 1], [], []>} : vector<1x20xf32>, vector<20x512xf32>, vector<1x512xf32> -> vector<1x512xf32>
    %16 = arith.addf %4, %15 : vector<1x512xf32>
    %c0_16 = arith.constant 0 : index
    %c0_17 = arith.constant 0 : index
    %17 = vector.load %arg7[%c0_16, %c0_17] : memref<128x512xf32, #tpu.memory_space<vmem>>, vector<128x512xf32>
    %cst_18 = arith.constant dense<0.000000e+00> : vector<1x512xf32>
    %18 = tpu.matmul %11, %17, %cst_18 {dimension_numbers = #tpu.dot_dimension_numbers<[1], [0], [0], [1], [0, 0, 1, 1], [], []>} : vector<1x128xf32>, vector<128x512xf32>, vector<1x512xf32> -> vector<1x512xf32>
    %19 = arith.addf %16, %18 : vector<1x512xf32>
    %20 = vector.extract_strided_slice %19 {offsets = [0, 0], sizes = [1, 128], strides = [1, 1]} : vector<1x512xf32> to vector<1x128xf32>
    %cst_19 = arith.constant 5.000000e-01 : f32
    %21 = vector.broadcast %cst_19 : f32 to vector<1x128xf32>
    %22 = arith.mulf %21, %20 : vector<1x128xf32>
    %23 = math.tanh %22 : vector<1x128xf32>
    %cst_20 = arith.constant 1.000000e+00 : f32
    %24 = vector.broadcast %cst_20 : f32 to vector<1x128xf32>
    %25 = arith.addf %23, %24 : vector<1x128xf32>
    %cst_21 = arith.constant 5.000000e-01 : f32
    %26 = vector.broadcast %cst_21 : f32 to vector<1x128xf32>
    %27 = arith.mulf %26, %25 : vector<1x128xf32>
    %28 = vector.extract_strided_slice %19 {offsets = [0, 128], sizes = [1, 128], strides = [1, 1]} : vector<1x512xf32> to vector<1x128xf32>
    %cst_22 = arith.constant 5.000000e-01 : f32
    %29 = vector.broadcast %cst_22 : f32 to vector<1x128xf32>
    %30 = arith.mulf %29, %28 : vector<1x128xf32>
    %31 = math.tanh %30 : vector<1x128xf32>
    %cst_23 = arith.constant 1.000000e+00 : f32
    %32 = vector.broadcast %cst_23 : f32 to vector<1x128xf32>
    %33 = arith.addf %31, %32 : vector<1x128xf32>
    %cst_24 = arith.constant 5.000000e-01 : f32
    %34 = vector.broadcast %cst_24 : f32 to vector<1x128xf32>
    %35 = arith.mulf %34, %33 : vector<1x128xf32>
    %36 = vector.extract_strided_slice %19 {offsets = [0, 256], sizes = [1, 128], strides = [1, 1]} : vector<1x512xf32> to vector<1x128xf32>
    %37 = math.tanh %36 : vector<1x128xf32>
    %38 = vector.extract_strided_slice %19 {offsets = [0, 384], sizes = [1, 128], strides = [1, 1]} : vector<1x512xf32> to vector<1x128xf32>
    %cst_25 = arith.constant 5.000000e-01 : f32
    %39 = vector.broadcast %cst_25 : f32 to vector<1x128xf32>
    %40 = arith.mulf %39, %38 : vector<1x128xf32>
    %41 = math.tanh %40 : vector<1x128xf32>
    %cst_26 = arith.constant 1.000000e+00 : f32
    %42 = vector.broadcast %cst_26 : f32 to vector<1x128xf32>
    %43 = arith.addf %41, %42 : vector<1x128xf32>
    %cst_27 = arith.constant 5.000000e-01 : f32
    %44 = vector.broadcast %cst_27 : f32 to vector<1x128xf32>
    %45 = arith.mulf %44, %43 : vector<1x128xf32>
    %46 = arith.mulf %35, %12 : vector<1x128xf32>
    %47 = arith.mulf %27, %37 : vector<1x128xf32>
    %48 = arith.addf %46, %47 : vector<1x128xf32>
    %49 = math.tanh %48 : vector<1x128xf32>
    %50 = arith.mulf %45, %49 : vector<1x128xf32>
    %c0_28 = arith.constant 0 : index
    %c0_29 = arith.constant 0 : index
    %51 = vector.load %arg9[%c0_28, %c0_29] : memref<128x640xf32, #tpu.memory_space<vmem>>, vector<128x640xf32>
    %cst_30 = arith.constant dense<0.000000e+00> : vector<1x640xf32>
    %52 = tpu.matmul %50, %51, %cst_30 {dimension_numbers = #tpu.dot_dimension_numbers<[1], [0], [0], [1], [0, 0, 1, 1], [], []>} : vector<1x128xf32>, vector<128x640xf32>, vector<1x640xf32> -> vector<1x640xf32>
    %c0_31 = arith.constant 0 : index
    %c0_32 = arith.constant 0 : index
    %53 = vector.load %arg10[%c0_31, %c0_32] : memref<1x640xf32, #tpu.memory_space<vmem>>, vector<1x640xf32>
    %54 = arith.addf %52, %53 : vector<1x640xf32>
    %55 = vector.extract_strided_slice %54 {offsets = [0, 0], sizes = [1, 8], strides = [1, 1]} : vector<1x640xf32> to vector<1x8xf32>
    %cst_33 = arith.constant 5.000000e-01 : f32
    %56 = vector.broadcast %cst_33 : f32 to vector<1x8xf32>
    %57 = arith.mulf %56, %55 : vector<1x8xf32>
    %58 = math.tanh %57 : vector<1x8xf32>
    %cst_34 = arith.constant 1.000000e+00 : f32
    %59 = vector.broadcast %cst_34 : f32 to vector<1x8xf32>
    %60 = arith.addf %58, %59 : vector<1x8xf32>
    %cst_35 = arith.constant 5.000000e-01 : f32
    %61 = vector.broadcast %cst_35 : f32 to vector<1x8xf32>
    %62 = arith.mulf %61, %60 : vector<1x8xf32>
    %63 = vector.extract_strided_slice %54 {offsets = [0, 128], sizes = [1, 20], strides = [1, 1]} : vector<1x640xf32> to vector<1x20xf32>
    %64 = math.tanh %63 : vector<1x20xf32>
    %65 = vector.extract_strided_slice %54 {offsets = [0, 256], sizes = [1, 1], strides = [1, 1]} : vector<1x640xf32> to vector<1x1xf32>
    %cst_36 = arith.constant 0.000000e+00 : f32
    %66 = vector.broadcast %cst_36 : f32 to vector<1x1xf32>
    %67 = arith.maximumf %65, %66 : vector<1x1xf32>
    %68 = math.absf %65 : vector<1x1xf32>
    %cst_37 = arith.constant 0.000000e+00 : f32
    %69 = vector.broadcast %cst_37 : f32 to vector<1x1xf32>
    %70 = arith.subf %69, %68 : vector<1x1xf32>
    %71 = math.exp %70 : vector<1x1xf32>
    %cst_38 = arith.constant 1.000000e+00 : f32
    %72 = vector.broadcast %cst_38 : f32 to vector<1x1xf32>
    %73 = arith.addf %72, %71 : vector<1x1xf32>
    %74 = math.log %73 : vector<1x1xf32>
    %75 = arith.addf %67, %74 : vector<1x1xf32>
    %cst_39 = arith.constant 9.99999993E-9 : f32
    %76 = vector.broadcast %cst_39 : f32 to vector<1x1xf32>
    %77 = arith.addf %75, %76 : vector<1x1xf32>
    %78 = vector.extract_strided_slice %54 {offsets = [0, 384], sizes = [1, 20], strides = [1, 1]} : vector<1x640xf32> to vector<1x20xf32>
    %cst_40 = arith.constant 5.000000e-01 : f32
    %79 = vector.broadcast %cst_40 : f32 to vector<1x20xf32>
    %80 = arith.mulf %79, %78 : vector<1x20xf32>
    %81 = math.tanh %80 : vector<1x20xf32>
    %cst_41 = arith.constant 1.000000e+00 : f32
    %82 = vector.broadcast %cst_41 : f32 to vector<1x20xf32>
    %83 = arith.addf %81, %82 : vector<1x20xf32>
    %cst_42 = arith.constant 5.000000e-01 : f32
    %84 = vector.broadcast %cst_42 : f32 to vector<1x20xf32>
    %85 = arith.mulf %84, %83 : vector<1x20xf32>
    %86 = vector.extract_strided_slice %54 {offsets = [0, 512], sizes = [1, 20], strides = [1, 1]} : vector<1x640xf32> to vector<1x20xf32>
    %87 = math.tanh %86 : vector<1x20xf32>
    %88 = arith.mulf %64, %64 : vector<1x20xf32>
    %cst_43 = arith.constant dense<0.000000e+00> : vector<1xf32>
    %89 = vector.multi_reduction <add>, %88, %cst_43 [1] : vector<1x20xf32> to vector<1xf32>
    %90 = vector.shape_cast %89 : vector<1xf32> to vector<1x1xf32>
    %cst_44 = arith.constant 1.000000e-16 : f32
    %91 = vector.broadcast %cst_44 : f32 to vector<1x1xf32>
    %92 = arith.addf %90, %91 : vector<1x1xf32>
    %93 = math.rsqrt %92 : vector<1x1xf32>
    %94 = vector.broadcast %93 : vector<1x1xf32> to vector<1x20xf32>
    %95 = arith.mulf %64, %94 : vector<1x20xf32>
    %96 = arith.mulf %13, %13 : vector<20x128xf32>
    %cst_45 = arith.constant dense<0.000000e+00> : vector<128xf32>
    %97 = vector.multi_reduction <add>, %96, %cst_45 [0] : vector<20x128xf32> to vector<128xf32>
    %98 = vector.shape_cast %97 : vector<128xf32> to vector<1x128xf32>
    %cst_46 = arith.constant 1.000000e-16 : f32
    %99 = vector.broadcast %cst_46 : f32 to vector<1x128xf32>
    %100 = arith.addf %98, %99 : vector<1x128xf32>
    %101 = math.rsqrt %100 : vector<1x128xf32>
    %cst_47 = arith.constant dense<0.000000e+00> : vector<1x128xf32>
    %102 = tpu.matmul %95, %13, %cst_47 {dimension_numbers = #tpu.dot_dimension_numbers<[1], [0], [0], [1], [0, 0, 1, 1], [], []>} : vector<1x20xf32>, vector<20x128xf32>, vector<1x128xf32> -> vector<1x128xf32>
    %103 = arith.mulf %102, %101 : vector<1x128xf32>
    %104 = vector.broadcast %77 : vector<1x1xf32> to vector<1x128xf32>
    %105 = arith.mulf %104, %103 : vector<1x128xf32>
    %cst_48 = arith.constant dense<0xFF800000> : vector<1xf32>
    %106 = vector.multi_reduction <maximumf>, %105, %cst_48 [1] : vector<1x128xf32> to vector<1xf32>
    %107 = vector.shape_cast %106 : vector<1xf32> to vector<1x1xf32>
    %108 = vector.broadcast %107 : vector<1x1xf32> to vector<1x128xf32>
    %109 = arith.subf %105, %108 : vector<1x128xf32>
    %110 = math.exp %109 : vector<1x128xf32>
    %cst_49 = arith.constant dense<0.000000e+00> : vector<1xf32>
    %111 = vector.multi_reduction <add>, %110, %cst_49 [1] : vector<1x128xf32> to vector<1xf32>
    %112 = vector.shape_cast %111 : vector<1xf32> to vector<1x1xf32>
    %113 = tpu.reciprocal %112 {approx = true} : vector<1x1xf32> -> vector<1x1xf32>
    %114 = vector.broadcast %113 : vector<1x1xf32> to vector<1x128xf32>
    %115 = arith.mulf %110, %114 : vector<1x128xf32>
    %cst_50 = arith.constant dense<0.000000e+00> : vector<20x1xf32>
    %116 = tpu.matmul %9, %85, %cst_50 {dimension_numbers = #tpu.dot_dimension_numbers<[1], [1], [0], [0], [0, 0, 1, 0], [], []>} : vector<20x20xf32>, vector<1x20xf32>, vector<20x1xf32> -> vector<20x1xf32>
    %cst_51 = arith.constant dense<0.000000e+00> : vector<20x1xf32>
    %117 = tpu.matmul %9, %87, %cst_51 {dimension_numbers = #tpu.dot_dimension_numbers<[1], [1], [0], [0], [0, 0, 1, 0], [], []>} : vector<20x20xf32>, vector<1x20xf32>, vector<20x1xf32> -> vector<20x1xf32>
    %118 = vector.broadcast %116 : vector<20x1xf32> to vector<20x128xf32>
    %119 = vector.broadcast %115 : vector<1x128xf32> to vector<20x128xf32>
    %120 = arith.mulf %118, %119 : vector<20x128xf32>
    %cst_52 = arith.constant 1.000000e+00 : f32
    %121 = vector.broadcast %cst_52 : f32 to vector<20x128xf32>
    %122 = arith.subf %121, %120 : vector<20x128xf32>
    %123 = arith.mulf %13, %122 : vector<20x128xf32>
    %124 = vector.broadcast %117 : vector<20x1xf32> to vector<20x128xf32>
    %125 = vector.broadcast %115 : vector<1x128xf32> to vector<20x128xf32>
    %126 = arith.mulf %124, %125 : vector<20x128xf32>
    %127 = arith.addf %123, %126 : vector<20x128xf32>
    %cst_53 = arith.constant dense<0.000000e+00> : vector<1x20xf32>
    %128 = tpu.matmul %115, %127, %cst_53 {dimension_numbers = #tpu.dot_dimension_numbers<[1], [1], [0], [0], [0, 0, 1, 0], [], []>} : vector<1x128xf32>, vector<20x128xf32>, vector<1x20xf32> -> vector<1x20xf32>
    %c0_54 = arith.constant 0 : index
    %c0_55 = arith.constant 0 : index
    %129 = vector.load %arg11[%c0_54, %c0_55] : memref<1x8xf32, #tpu.memory_space<vmem>>, vector<1x8xf32>
    tpu.vector_store %arg11[%c0_54, %c0_55], %62 {strides = array<i32>} : memref<1x8xf32, #tpu.memory_space<vmem>>, vector<1x8xf32>,
    %c0_56 = arith.constant 0 : index
    %c0_57 = arith.constant 0 : index
    %130 = vector.load %arg12[%c0_56, %c0_57] : memref<1x128xf32, #tpu.memory_space<vmem>>, vector<1x128xf32>
    tpu.vector_store %arg12[%c0_56, %c0_57], %50 {strides = array<i32>} : memref<1x128xf32, #tpu.memory_space<vmem>>, vector<1x128xf32>,
    %c0_58 = arith.constant 0 : index
    %c0_59 = arith.constant 0 : index
    %131 = vector.load %arg13[%c0_58, %c0_59] : memref<1x128xf32, #tpu.memory_space<vmem>>, vector<1x128xf32>
    tpu.vector_store %arg13[%c0_58, %c0_59], %48 {strides = array<i32>} : memref<1x128xf32, #tpu.memory_space<vmem>>, vector<1x128xf32>,
    %c0_60 = arith.constant 0 : index
    %c0_61 = arith.constant 0 : index
    %132 = vector.load %arg14[%c0_60, %c0_61] : memref<1x20xf32, #tpu.memory_space<vmem>>, vector<1x20xf32>
    tpu.vector_store %arg14[%c0_60, %c0_61], %128 {strides = array<i32>} : memref<1x20xf32, #tpu.memory_space<vmem>>, vector<1x20xf32>,
    %c0_62 = arith.constant 0 : index
    %c0_63 = arith.constant 0 : index
    %133 = vector.load %arg15[%c0_62, %c0_63] : memref<1x128xf32, #tpu.memory_space<vmem>>, vector<1x128xf32>
    tpu.vector_store %arg15[%c0_62, %c0_63], %115 {strides = array<i32>} : memref<1x128xf32, #tpu.memory_space<vmem>>, vector<1x128xf32>,
    %c0_64 = arith.constant 0 : index
    %c0_65 = arith.constant 0 : index
    %134 = vector.load %arg16[%c0_64, %c0_65] : memref<20x128xf32, #tpu.memory_space<vmem>>, vector<20x128xf32>
    tpu.vector_store %arg16[%c0_64, %c0_65], %127 {strides = array<i32>} : memref<20x128xf32, #tpu.memory_space<vmem>>, vector<20x128xf32>,
    return
  }
}

</mosaic_0001>

<llo_original>
// kernel: ntm_forward.1
$region0: #{ntm_forward.1}
  #allocation0 [shape = 'u32[]', space=smem, size = 0x4, offset = 0x4, fixed_abs, tag = 'smem constant byte address 0x4 - core index']
  #allocation1 [shape = 'u32[144,128]{1,0:T(1,128)}', space=vmem, size = 0x12000, scoped, tag = 'internal scratch']
  %s0 = inlined_call_operand.vmem [shape: f32[1,8], index: 0, kind: input, shape index: {}]
  %s1 = inlined_call_operand.vmem [shape: f32[1,20], index: 1, kind: input, shape index: {}]
  %s2 = inlined_call_operand.vmem [shape: f32[1,128], index: 2, kind: input, shape index: {}]
  %s3 = inlined_call_operand.vmem [shape: f32[1,128], index: 3, kind: input, shape index: {}]
  %s4 = inlined_call_operand.vmem [shape: f32[20,128], index: 4, kind: input, shape index: {}, may-alias: {4,16}]
  %s5 = inlined_call_operand.vmem [shape: f32[8,512], index: 5, kind: input, shape index: {}]
  %s6 = inlined_call_operand.hbm [shape: f32[20,512], index: 6, kind: input, shape index: {}]
  %s7 = inlined_call_operand.hbm [shape: f32[128,512], index: 7, kind: input, shape index: {}]
  %s8 = inlined_call_operand.vmem [shape: f32[1,512], index: 8, kind: input, shape index: {}]
  %s9 = inlined_call_operand.hbm [shape: f32[128,640], index: 9, kind: input, shape index: {}]
  %s10 = inlined_call_operand.vmem [shape: f32[1,640], index: 10, kind: input, shape index: {}]
  %s11 = inlined_call_operand.hbm [shape: f32[1,8], index: 11, kind: output, shape index: {0}]
  %s12 = inlined_call_operand.vmem [shape: f32[1,128], index: 12, kind: output, shape index: {1}]
  %s13 = inlined_call_operand.vmem [shape: f32[1,128], index: 13, kind: output, shape index: {2}]
  %s14 = inlined_call_operand.hbm [shape: f32[1,20], index: 14, kind: output, shape index: {3}]
  %s15 = inlined_call_operand.hbm [shape: f32[1,128], index: 15, kind: output, shape index: {4}]
  %s16 = inlined_call_operand.vmem [shape: f32[20,128], index: 16, kind: output, shape index: {5}, may-alias: {4,16}]
  %17 = xla_tuple %s11, %s12, %s13, %s14, %s15, %s16
  %s18 = sld [smem:[#allocation0]]
  $region106: #{ntm_forward.1} parent=0
    _
  %s20 = ssub.s32 1, %s18
  %s21 = scalar_select 0, %s20, %s18
  $region1: #{ntm_forward.1} parent=0
    #allocation2 [shape = 'u8[49152]{0}', space=vmem, size = 0xc000, scoped, tag = 'input window, operand 6, single buffered']
    #allocation3 [shape = 's32[1]{0}', space=sflag, size = 0x4, scoped, tag = 'scoped memory for ntm_forward.1']
    #allocation4 [shape = 's32[1]{0}', space=sflag, size = 0x4, scoped, tag = 'scoped memory for ntm_forward.1']
    #allocation5 [shape = 'u8[262144]{0}', space=vmem, size = 0x40000, scoped, tag = 'input window, operand 7, single buffered']
    #allocation6 [shape = 's32[1]{0}', space=sflag, size = 0x4, scoped, tag = 'scoped memory for ntm_forward.1']
    #allocation7 [shape = 'u8[327680]{0}', space=vmem, size = 0x50000, scoped, tag = 'input window, operand 9, single buffered']
    #allocation8 [shape = 'u8[512]{0}', space=vmem, size = 0x400, scoped, tag = 'output window, operand 0, single buffered']
    #allocation9 [shape = 'u8[512]{0}', space=vmem, size = 0x400, scoped, tag = 'output window, operand 3, single buffered']
    #allocation10 [shape = 's32[1]{0}', space=sflag, size = 0x4, scoped, tag = 'scoped memory for ntm_forward.1']
    #allocation11 [shape = 'u8[512]{0}', space=vmem, size = 0x400, scoped, tag = 'output window, operand 4, single buffered']
    %22 = vsyncpa [#allocation3], 0
    %23 = vsyncpa [#allocation6], 0
    %24 = vsyncpa [#allocation4], 0
    %25 = vsyncpa [#allocation10], 0
    // Predicated region
    $region2: #{ntm_forward.1} parent=1 // pred_check
      _
    $region3: #{ntm_forward.1} parent=1 // pred_check_branch
      %27 = sbr.rel (0) target = $region5
    $region4: #{ntm_forward.1} parent=1 // pred_region
      _
    $region5: #{ntm_forward.1} parent=1 // pred_fallthru
      _
    // Predicated region
    $region6: #{ntm_forward.1} parent=1 // pred_check
      _
    $region7: #{ntm_forward.1} parent=1 // pred_check_branch
      %29 = sbr.rel (0) target = $region9
    $region8: #{ntm_forward.1} parent=1 // pred_region
      _
    $region9: #{ntm_forward.1} parent=1 // pred_fallthru
      _
    // Predicated region
    $region10: #{ntm_forward.1} parent=1 // pred_check
      _
    $region11: #{ntm_forward.1} parent=1 // pred_check_branch
      %31 = sbr.rel (0) target = $region13
    $region12: #{ntm_forward.1} parent=1 // pred_region
      _
    $region13: #{ntm_forward.1} parent=1 // pred_fallthru
      _
    // Predicated region
    $region14: #{ntm_forward.1} parent=1 // pred_check
      _
    $region15: #{ntm_forward.1} parent=1 // pred_check_branch
      %33 = sbr.rel (0) target = $region17
    $region16: #{ntm_forward.1} parent=1 // pred_region
      _
    $region17: #{ntm_forward.1} parent=1 // pred_fallthru
      _
    // Predicated region
    $region18: #{ntm_forward.1} parent=1 // pred_check
      _
    $region19: #{ntm_forward.1} parent=1 // pred_check_branch
      %35 = sbr.rel (0) target = $region21
    $region20: #{ntm_forward.1} parent=1 // pred_region
      _
    $region21: #{ntm_forward.1} parent=1 // pred_fallthru
      _
    // Predicated region
    $region22: #{ntm_forward.1} parent=1 // pred_check
      _
    $region23: #{ntm_forward.1} parent=1 // pred_check_branch
      %37 = sbr.rel (0) target = $region25
    $region24: #{ntm_forward.1} parent=1 // pred_region
      _
    $region25: #{ntm_forward.1} parent=1 // pred_fallthru
      _
    // Predicated region
    $region26: #{ntm_forward.1} parent=1 // pred_check
      _
    $region27: #{ntm_forward.1} parent=1 // pred_check_branch
      %39 = sbr.rel (0) target = $region29
    $region28: #{ntm_forward.1} parent=1 // pred_region
      %s41 = ssub.s32 1536, 1536
      %42 = vsyncadd [#allocation3], %s41
      %s43 = sshll.u32 [#allocation2], 4
      %s44 = int_to_ptr.vmem [resolvable:$true] %s43
      %49 = dma.hbm_to_vmem [thread:$0]  %s6, 1536, %s44, [#allocation3], 512, 512, 32
    $region29: #{ntm_forward.1} parent=1 // pred_fallthru
      _
    // Predicated region
    $region30: #{ntm_forward.1} parent=1 // pred_check
      _
    $region31: #{ntm_forward.1} parent=1 // pred_check_branch
      %51 = sbr.rel (0) target = $region33
    $region32: #{ntm_forward.1} parent=1 // pred_region
      %s53 = ssub.s32 8192, 8192
      %54 = vsyncadd [#allocation6], %s53
      %s55 = sshll.u32 [#allocation5], 4
      %s56 = int_to_ptr.vmem [resolvable:$true] %s55
      %61 = dma.hbm_to_vmem [thread:$0]  %s7, 8192, %s56, [#allocation6], 512, 512, 32
    $region33: #{ntm_forward.1} parent=1 // pred_fallthru
      _
    // Predicated region
    $region34: #{ntm_forward.1} parent=1 // pred_check
      _
    $region35: #{ntm_forward.1} parent=1 // pred_check_branch
      %63 = sbr.rel (0) target = $region37
    $region36: #{ntm_forward.1} parent=1 // pred_region
      _
    $region37: #{ntm_forward.1} parent=1 // pred_fallthru
      _
    // Predicated region
    $region38: #{ntm_forward.1} parent=1 // pred_check
      _
    $region39: #{ntm_forward.1} parent=1 // pred_check_branch
      %65 = sbr.rel (0) target = $region41
    $region40: #{ntm_forward.1} parent=1 // pred_region
      %s67 = ssub.s32 10240, 10240
      %68 = vsyncadd [#allocation6], %s67
      %s69 = sshll.u32 [#allocation7], 4
      %s70 = int_to_ptr.vmem [resolvable:$true] %s69
      %75 = dma.hbm_to_vmem [thread:$0]  %s9, 10240, %s70, [#allocation6], 640, 640, 40
    $region41: #{ntm_forward.1} parent=1 // pred_fallthru
      _
    // Predicated region
    $region42: #{ntm_forward.1} parent=1 // pred_check
      _
    $region43: #{ntm_forward.1} parent=1 // pred_check_branch
      %77 = sbr.rel (0) target = $region45
    $region44: #{ntm_forward.1} parent=1 // pred_region
      _
    $region45: #{ntm_forward.1} parent=1 // pred_fallthru
      _
    // Predicated region
    $region46: #{ntm_forward.1} parent=1 // pred_check
      _
    $region47: #{ntm_forward.1} parent=1 // pred_check_branch
      %79 = sbr.rel (0) target = $region49
    $region48: #{ntm_forward.1} parent=1 // pred_region
      %80 = dma.done [#allocation3], 1536
    $region49: #{ntm_forward.1} parent=1 // pred_fallthru
      _
    // Predicated region
    $region50: #{ntm_forward.1} parent=1 // pred_check
      _
    $region51: #{ntm_forward.1} parent=1 // pred_check_branch
      %82 = sbr.rel (0) target = $region53
    $region52: #{ntm_forward.1} parent=1 // pred_region
      %83 = dma.done [#allocation6], 8192
    $region53: #{ntm_forward.1} parent=1 // pred_fallthru
      _
    // Predicated region
    $region54: #{ntm_forward.1} parent=1 // pred_check
      _
    $region55: #{ntm_forward.1} parent=1 // pred_check_branch
      %85 = sbr.rel (0) target = $region57
    $region56: #{ntm_forward.1} parent=1 // pred_region
      %86 = dma.done [#allocation6], 10240
    $region57: #{ntm_forward.1} parent=1 // pred_fallthru
      _
    %v87 = vld [vmem:[%s0] sm:$0x1]
    %v88 = vld [vmem:[%s5] sm:$0xff]
    %v89 = vld [vmem:[%s5 + $0x8] sm:$0xff]
    %v90 = vld [vmem:[%s5 + $0x10] sm:$0xff]
    %v91 = vld [vmem:[%s5 + $0x18] sm:$0xff]
    %v92 = vld [vmem:[%s8] sm:$0xf]
    %v94 = vlaneseq
    %v95 = vshrl.u32 %v94, 7
    %v96 = vsub.s32 0, %v95
    %v97 = vrot.slane %v92, %v96
    %v98 = vlaneseq
    %v99 = vshrl.u32 %v98, 7
    %v100 = vsub.s32 1, %v99
    %v101 = vrot.slane %v92, %v100
    %v102 = vlaneseq
    %v103 = vshrl.u32 %v102, 7
    %v104 = vsub.s32 2, %v103
    %v105 = vrot.slane %v92, %v104
    %v106 = vlaneseq
    %v107 = vshrl.u32 %v106, 7
    %v108 = vsub.s32 3, %v107
    %v109 = vrot.slane %v92, %v108
    %vm114 = vcmask 64512
    %v116 = vsel %vm114, %v87, 0
    %118 = vmatprep.subr.mxu0 %v89
    %119 = vmatpush1.msra.mxu0 %v88
    %120 = vmatprep.subr.mxu0 0.0
    %121 = vmatpush1.msra.mxu0 0.0
    %122 = vmatprep.subr.mxu0 0.0
    %123 = vmatpush1.msra.mxu0 0.0
    %124 = vmatprep.subr.mxu0 0.0
    %125 = vmatpush1.msra.mxu0 0.0
    %126 = vmatprep.subr.mxu0 0.0
    %127 = vmatpush1.msra.mxu0 0.0
    %128 = vmatprep.subr.mxu0 0.0
    %129 = vmatpush1.msra.mxu0 0.0
    %130 = vmatprep.subr.mxu0 0.0
    %131 = vmatpush1.msra.mxu0 0.0
    %132 = vmatprep.subr.mxu0 0.0
    %133 = vmatpush1.msra.mxu0 0.0
    %134 = vmatprep.subr.mxu0 0.0
    %135 = vmatpush1.msra.mxu0 0.0
    %136 = vmatprep.subr.mxu0 0.0
    %137 = vmatpush1.msra.mxu0 0.0
    %138 = vmatprep.subr.mxu0 0.0
    %139 = vmatpush1.msra.mxu0 0.0
    %140 = vmatprep.subr.mxu0 0.0
    %141 = vmatpush1.msra.mxu0 0.0
    %142 = vmatprep.subr.mxu0 0.0
    %143 = vmatpush1.msra.mxu0 0.0
    %144 = vmatprep.subr.mxu0 0.0
    %145 = vmatpush1.msra.mxu0 0.0
    %146 = vmatprep.subr.mxu0 0.0
    %147 = vmatpush1.msra.mxu0 0.0
    %148 = vmatprep.subr.mxu0 0.0
    %149 = vmatpush1.msra.mxu0 0.0
    %150 = vmatprep.subr.mxu0 0.0
    %151 = vmatpush1.msra.mxu0 0.0
    %152 = vmatprep.subr.mxu0 0.0
    %153 = vmatpush1.msra.mxu0 0.0
    %154 = vmatprep.subr.mxu0 0.0
    %155 = vmatpush1.msra.mxu0 0.0
    %156 = vmatprep.subr.mxu0 0.0
    %157 = vmatpush1.msra.mxu0 0.0
    %158 = vmatprep.subr.mxu0 0.0
    %159 = vmatpush1.msra.mxu0 0.0
    %160 = vmatprep.subr.mxu0 0.0
    %161 = vmatpush1.msra.mxu0 0.0
    %162 = vmatprep.subr.mxu0 0.0
    %163 = vmatpush1.msra.mxu0 0.0
    %164 = vmatprep.subr.mxu0 0.0
    %165 = vmatpush1.msra.mxu0 0.0
    %166 = vmatprep.subr.mxu0 0.0
    %167 = vmatpush1.msra.mxu0 0.0
    %168 = vmatprep.subr.mxu0 0.0
    %169 = vmatpush1.msra.mxu0 0.0
    %170 = vmatprep.subr.mxu0 0.0
    %171 = vmatpush1.msra.mxu0 0.0
    %172 = vmatprep.subr.mxu0 0.0
    %173 = vmatpush1.msra.mxu0 0.0
    %174 = vmatprep.subr.mxu0 0.0
    %175 = vmatpush1.msra.mxu0 0.0
    %176 = vmatprep.subr.mxu0 0.0
    %177 = vmatpush1.msra.mxu0 0.0
    %178 = vmatprep.subr.mxu0 0.0
    %179 = vmatpush1.msra.mxu0 0.0
    %180 = vmatprep.subr.mxu0 0.0
    %181 = vmatpush1.msra.mxu0 0.0
    %182 = vmatprep.mubr.f32.mxu0 0.0
    %183 = vmatmul.mubr.f32.gmra.mrb[0].mxu0 %v116
    %v184 = vpop.f32.mrb[0].mxu0
    %v185 = vadd.f32 %v97, %v184
    %v186 = vpop.f32.mrb[0].mxu0
    %v187 = vadd.f32 %v101, %v186
    %188 = vdwg.mxu0
    %189 = vmatprep.subr.mxu0 %v91
    %190 = vmatpush1.msra.mxu0 %v90
    %191 = vmatprep.subr.mxu0 0.0
    %192 = vmatpush1.msra.mxu0 0.0
    %193 = vmatprep.subr.mxu0 0.0
    %194 = vmatpush1.msra.mxu0 0.0
    %195 = vmatprep.subr.mxu0 0.0
    %196 = vmatpush1.msra.mxu0 0.0
    %197 = vmatprep.subr.mxu0 0.0
    %198 = vmatpush1.msra.mxu0 0.0
    %199 = vmatprep.subr.mxu0 0.0
    %200 = vmatpush1.msra.mxu0 0.0
    %201 = vmatprep.subr.mxu0 0.0
    %202 = vmatpush1.msra.mxu0 0.0
    %203 = vmatprep.subr.mxu0 0.0
    %204 = vmatpush1.msra.mxu0 0.0
    %205 = vmatprep.subr.mxu0 0.0
    %206 = vmatpush1.msra.mxu0 0.0
    %207 = vmatprep.subr.mxu0 0.0
    %208 = vmatpush1.msra.mxu0 0.0
    %209 = vmatprep.subr.mxu0 0.0
    %210 = vmatpush1.msra.mxu0 0.0
    %211 = vmatprep.subr.mxu0 0.0
    %212 = vmatpush1.msra.mxu0 0.0
    %213 = vmatprep.subr.mxu0 0.0
    %214 = vmatpush1.msra.mxu0 0.0
    %215 = vmatprep.subr.mxu0 0.0
    %216 = vmatpush1.msra.mxu0 0.0
    %217 = vmatprep.subr.mxu0 0.0
    %218 = vmatpush1.msra.mxu0 0.0
    %219 = vmatprep.subr.mxu0 0.0
    %220 = vmatpush1.msra.mxu0 0.0
    %221 = vmatprep.subr.mxu0 0.0
    %222 = vmatpush1.msra.mxu0 0.0
    %223 = vmatprep.subr.mxu0 0.0
    %224 = vmatpush1.msra.mxu0 0.0
    %225 = vmatprep.subr.mxu0 0.0
    %226 = vmatpush1.msra.mxu0 0.0
    %227 = vmatprep.subr.mxu0 0.0
    %228 = vmatpush1.msra.mxu0 0.0
    %229 = vmatprep.subr.mxu0 0.0
    %230 = vmatpush1.msra.mxu0 0.0
    %231 = vmatprep.subr.mxu0 0.0
    %232 = vmatpush1.msra.mxu0 0.0
    %233 = vmatprep.subr.mxu0 0.0
    %234 = vmatpush1.msra.mxu0 0.0
    %235 = vmatprep.subr.mxu0 0.0
    %236 = vmatpush1.msra.mxu0 0.0
    %237 = vmatprep.subr.mxu0 0.0
    %238 = vmatpush1.msra.mxu0 0.0
    %239 = vmatprep.subr.mxu0 0.0
    %240 = vmatpush1.msra.mxu0 0.0
    %241 = vmatprep.subr.mxu0 0.0
    %242 = vmatpush1.msra.mxu0 0.0
    %243 = vmatprep.subr.mxu0 0.0
    %244 = vmatpush1.msra.mxu0 0.0
    %245 = vmatprep.subr.mxu0 0.0
    %246 = vmatpush1.msra.mxu0 0.0
    %247 = vmatprep.subr.mxu0 0.0
    %248 = vmatpush1.msra.mxu0 0.0
    %249 = vmatprep.subr.mxu0 0.0
    %250 = vmatpush1.msra.mxu0 0.0
    %251 = vmatprep.subr.mxu0 0.0
    %252 = vmatpush1.msra.mxu0 0.0
    %253 = vmatprep.mubr.f32.mxu0 0.0
    %254 = vmatmul.mubr.f32.gmra.mrb[0].mxu0 %v116
    %v255 = vpop.f32.mrb[0].mxu0
    %v256 = vadd.f32 %v105, %v255
    %v257 = vpop.f32.mrb[0].mxu0
    %v258 = vadd.f32 %v109, %v257
    %259 = vdwg.mxu0
    %v260 = vlaneseq
    %v261 = vshrl.u32 %v260, 7
    %v262 = vadd.s32 %v261, 8
    %v263 = vadd.s32 %v261, 16
    %v264 = vlaneseq
    %v265 = vand.u32 %v264, 127
    %vm266 = vcmp.eq.s32.totalorder %v261, %v265
    %vm267 = vcmp.eq.s32.totalorder %v262, %v265
    %vm268 = vcmp.eq.s32.totalorder %v263, %v265
    %v269 = vsel %vm266, 1, 0
    %v270 = vsel %vm267, 1, 0
    %v271 = vsel %vm268, 1, 0
    %v272 = vcvt.s32.f32 %v269
    %v273 = vcvt.s32.f32 %v270
    %v274 = vcvt.s32.f32 %v271
    %v275 = vld [vmem:[%s1] sm:$0x1]
    %v276 = vld [vmem:[%s2] sm:$0x1]
    %v277 = vld [vmem:[%s3] sm:$0x1]
    %v278 = vld [vmem:[%s4] sm:$0xff]
    %v279 = vld [vmem:[%s4 + $0x8] sm:$0xff]
    %v280 = vld [vmem:[%s4 + $0x10] sm:$0xf]
    %v281 = vld [vmem:[#allocation2] sm:$0xff]
    %v282 = vld [vmem:[#allocation2 + $0x8] sm:$0xff]
    %v283 = vld [vmem:[#allocation2 + $0x10] sm:$0xff]
    %v284 = vld [vmem:[#allocation2 + $0x18] sm:$0xff]
    %v285 = vld [vmem:[#allocation2 + $0x20] sm:$0xff]
    %v286 = vld [vmem:[#allocation2 + $0x28] sm:$0xff]
    %v287 = vld [vmem:[#allocation2 + $0x30] sm:$0xff]
    %v288 = vld [vmem:[#allocation2 + $0x38] sm:$0xff]
    %v289 = vld [vmem:[#allocation2 + $0x40] sm:$0xf]
    %v290 = vld [vmem:[#allocation2 + $0x48] sm:$0xf]
    %v291 = vld [vmem:[#allocation2 + $0x50] sm:$0xf]
    %v292 = vld [vmem:[#allocation2 + $0x58] sm:$0xf]
    %vm293 = vcmask 162816
    %v295 = vsel %vm293, %v275, 0
    %vm297 = vcmask 1043456
    %v299 = vsel %vm297, %v289, 0
    %v302 = vsel %vm297, %v290, 0
    %v305 = vsel %vm297, %v291, 0
    %v308 = vsel %vm297, %v292, 0
    %310 = vmatprep.subr.mxu0 %v282
    %311 = vmatpush1.msra.mxu0 %v281
    %312 = vmatprep.subr.mxu0 %v286
    %313 = vmatpush1.msra.mxu0 %v285
    %314 = vmatprep.subr.mxu0 %v302
    %315 = vmatpush1.msra.mxu0 %v299
    %316 = vmatprep.subr.mxu0 0.0
    %317 = vmatpush1.msra.mxu0 0.0
    %318 = vmatprep.subr.mxu0 0.0
    %319 = vmatpush1.msra.mxu0 0.0
    %320 = vmatprep.subr.mxu0 0.0
    %321 = vmatpush1.msra.mxu0 0.0
    %322 = vmatprep.subr.mxu0 0.0
    %323 = vmatpush1.msra.mxu0 0.0
    %324 = vmatprep.subr.mxu0 0.0
    %325 = vmatpush1.msra.mxu0 0.0
    %326 = vmatprep.subr.mxu0 0.0
    %327 = vmatpush1.msra.mxu0 0.0
    %328 = vmatprep.subr.mxu0 0.0
    %329 = vmatpush1.msra.mxu0 0.0
    %330 = vmatprep.subr.mxu0 0.0
    %331 = vmatpush1.msra.mxu0 0.0
    %332 = vmatprep.subr.mxu0 0.0
    %333 = vmatpush1.msra.mxu0 0.0
    %334 = vmatprep.subr.mxu0 0.0
    %335 = vmatpush1.msra.mxu0 0.0
    %336 = vmatprep.subr.mxu0 0.0
    %337 = vmatpush1.msra.mxu0 0.0
    %338 = vmatprep.subr.mxu0 0.0
    %339 = vmatpush1.msra.mxu0 0.0
    %340 = vmatprep.subr.mxu0 0.0
    %341 = vmatpush1.msra.mxu0 0.0
    %342 = vmatprep.subr.mxu0 0.0
    %343 = vmatpush1.msra.mxu0 0.0
    %344 = vmatprep.subr.mxu0 0.0
    %345 = vmatpush1.msra.mxu0 0.0
    %346 = vmatprep.subr.mxu0 0.0
    %347 = vmatpush1.msra.mxu0 0.0
    %348 = vmatprep.subr.mxu0 0.0
    %349 = vmatpush1.msra.mxu0 0.0
    %350 = vmatprep.subr.mxu0 0.0
    %351 = vmatpush1.msra.mxu0 0.0
    %352 = vmatprep.subr.mxu0 0.0
    %353 = vmatpush1.msra.mxu0 0.0
    %354 = vmatprep.subr.mxu0 0.0
    %355 = vmatpush1.msra.mxu0 0.0
    %356 = vmatprep.subr.mxu0 0.0
    %357 = vmatpush1.msra.mxu0 0.0
    %358 = vmatprep.subr.mxu0 0.0
    %359 = vmatpush1.msra.mxu0 0.0
    %360 = vmatprep.subr.mxu0 0.0
    %361 = vmatpush1.msra.mxu0 0.0
    %362 = vmatprep.subr.mxu0 0.0
    %363 = vmatpush1.msra.mxu0 0.0
    %364 = vmatprep.subr.mxu0 0.0
    %365 = vmatpush1.msra.mxu0 0.0
    %366 = vmatprep.subr.mxu0 0.0
    %367 = vmatpush1.msra.mxu0 0.0
    %368 = vmatprep.subr.mxu0 0.0
    %369 = vmatpush1.msra.mxu0 0.0
    %370 = vmatprep.subr.mxu0 0.0
    %371 = vmatpush1.msra.mxu0 0.0
    %372 = vmatprep.subr.mxu0 0.0
    %373 = vmatpush1.msra.mxu0 0.0
    %374 = vmatprep.mubr.f32.mxu0 0.0
    %375 = vmatmul.mubr.f32.gmra.mrb[0].mxu0 %v295
    %v376 = vpop.f32.mrb[0].mxu0
    %v377 = vadd.f32 0.0, %v376
    %v378 = vpop.f32.mrb[0].mxu0
    %v379 = vadd.f32 0.0, %v378
    %380 = vdwg.mxu0
    %381 = vmatprep.subr.mxu0 %v284
    %382 = vmatpush1.msra.mxu0 %v283
    %383 = vmatprep.subr.mxu0 %v288
    %384 = vmatpush1.msra.mxu0 %v287
    %385 = vmatprep.subr.mxu0 %v308
    %386 = vmatpush1.msra.mxu0 %v305
    %387 = vmatprep.subr.mxu0 0.0
    %388 = vmatpush1.msra.mxu0 0.0
    %389 = vmatprep.subr.mxu0 0.0
    %390 = vmatpush1.msra.mxu0 0.0
    %391 = vmatprep.subr.mxu0 0.0
    %392 = vmatpush1.msra.mxu0 0.0
    %393 = vmatprep.subr.mxu0 0.0
    %394 = vmatpush1.msra.mxu0 0.0
    %395 = vmatprep.subr.mxu0 0.0
    %396 = vmatpush1.msra.mxu0 0.0
    %397 = vmatprep.subr.mxu0 0.0
    %398 = vmatpush1.msra.mxu0 0.0
    %399 = vmatprep.subr.mxu0 0.0
    %400 = vmatpush1.msra.mxu0 0.0
    %401 = vmatprep.subr.mxu0 0.0
    %402 = vmatpush1.msra.mxu0 0.0
    %403 = vmatprep.subr.mxu0 0.0
    %404 = vmatpush1.msra.mxu0 0.0
    %405 = vmatprep.subr.mxu0 0.0
    %406 = vmatpush1.msra.mxu0 0.0
    %407 = vmatprep.subr.mxu0 0.0
    %408 = vmatpush1.msra.mxu0 0.0
    %409 = vmatprep.subr.mxu0 0.0
    %410 = vmatpush1.msra.mxu0 0.0
    %411 = vmatprep.subr.mxu0 0.0
    %412 = vmatpush1.msra.mxu0 0.0
    %413 = vmatprep.subr.mxu0 0.0
    %414 = vmatpush1.msra.mxu0 0.0
    %415 = vmatprep.subr.mxu0 0.0
    %416 = vmatpush1.msra.mxu0 0.0
    %417 = vmatprep.subr.mxu0 0.0
    %418 = vmatpush1.msra.mxu0 0.0
    %419 = vmatprep.subr.mxu0 0.0
    %420 = vmatpush1.msra.mxu0 0.0
    %421 = vmatprep.subr.mxu0 0.0
    %422 = vmatpush1.msra.mxu0 0.0
    %423 = vmatprep.subr.mxu0 0.0
    %424 = vmatpush1.msra.mxu0 0.0
    %425 = vmatprep.subr.mxu0 0.0
    %426 = vmatpush1.msra.mxu0 0.0
    %427 = vmatprep.subr.mxu0 0.0
    %428 = vmatpush1.msra.mxu0 0.0
    %429 = vmatprep.subr.mxu0 0.0
    %430 = vmatpush1.msra.mxu0 0.0
    %431 = vmatprep.subr.mxu0 0.0
    %432 = vmatpush1.msra.mxu0 0.0
    %433 = vmatprep.subr.mxu0 0.0
    %434 = vmatpush1.msra.mxu0 0.0
    %435 = vmatprep.subr.mxu0 0.0
    %436 = vmatpush1.msra.mxu0 0.0
    %437 = vmatprep.subr.mxu0 0.0
    %438 = vmatpush1.msra.mxu0 0.0
    %439 = vmatprep.subr.mxu0 0.0
    %440 = vmatpush1.msra.mxu0 0.0
    %441 = vmatprep.subr.mxu0 0.0
    %442 = vmatpush1.msra.mxu0 0.0
    %443 = vmatprep.subr.mxu0 0.0
    %444 = vmatpush1.msra.mxu0 0.0
    %445 = vmatprep.mubr.f32.mxu0 0.0
    %446 = vmatmul.mubr.f32.gmra.mrb[0].mxu0 %v295
    %v447 = vpop.f32.mrb[0].mxu0
    %v448 = vadd.f32 0.0, %v447
    %v449 = vpop.f32.mrb[0].mxu0
    %v450 = vadd.f32 0.0, %v449
    %451 = vdwg.mxu0
    %v452 = vadd.f32 %v185, %v377
    %v453 = vadd.f32 %v187, %v379
    %v454 = vadd.f32 %v256, %v448
    %v455 = vadd.f32 %v258, %v450
    %v456 = vld [vmem:[#allocation5] sm:$0xff]
    %v457 = vld [vmem:[#allocation5 + $0x8] sm:$0xff]
    %v458 = vld [vmem:[#allocation5 + $0x10] sm:$0xff]
    %v459 = vld [vmem:[#allocation5 + $0x18] sm:$0xff]
    %v460 = vld [vmem:[#allocation5 + $0x20] sm:$0xff]
    %v461 = vld [vmem:[#allocation5 + $0x28] sm:$0xff]
    %v462 = vld [vmem:[#allocation5 + $0x30] sm:$0xff]
    %v463 = vld [vmem:[#allocation5 + $0x38] sm:$0xff]
    %v464 = vld [vmem:[#allocation5 + $0x40] sm:$0xff]
    %v465 = vld [vmem:[#allocation5 + $0x48] sm:$0xff]
    %v466 = vld [vmem:[#allocation5 + $0x50] sm:$0xff]
    %v467 = vld [vmem:[#allocation5 + $0x58] sm:$0xff]
    %v468 = vld [vmem:[#allocation5 + $0x60] sm:$0xff]
    %v469 = vld [vmem:[#allocation5 + $0x68] sm:$0xff]
    %v470 = vld [vmem:[#allocation5 + $0x70] sm:$0xff]
    %v471 = vld [vmem:[#allocation5 + $0x78] sm:$0xff]
    %v472 = vld [vmem:[#allocation5 + $0x80] sm:$0xff]
    %v473 = vld [vmem:[#allocation5 + $0x88] sm:$0xff]
    %v474 = vld [vmem:[#allocation5 + $0x90] sm:$0xff]
    %v475 = vld [vmem:[#allocation5 + $0x98] sm:$0xff]
    %v476 = vld [vmem:[#allocation5 + $0xa0] sm:$0xff]
    %v477 = vld [vmem:[#allocation5 + $0xa8] sm:$0xff]
    %v478 = vld [vmem:[#allocation5 + $0xb0] sm:$0xff]
    %v479 = vld [vmem:[#allocation5 + $0xb8] sm:$0xff]
    %v480 = vld [vmem:[#allocation5 + $0xc0] sm:$0xff]
    %v481 = vld [vmem:[#allocation5 + $0xc8] sm:$0xff]
    %v482 = vld [vmem:[#allocation5 + $0xd0] sm:$0xff]
    %v483 = vld [vmem:[#allocation5 + $0xd8] sm:$0xff]
    %v484 = vld [vmem:[#allocation5 + $0xe0] sm:$0xff]
    %v485 = vld [vmem:[#allocation5 + $0xe8] sm:$0xff]
    %v486 = vld [vmem:[#allocation5 + $0xf0] sm:$0xff]
    %v487 = vld [vmem:[#allocation5 + $0xf8] sm:$0xff]
    %v488 = vld [vmem:[#allocation5 + $0x100] sm:$0xff]
    %v489 = vld [vmem:[#allocation5 + $0x108] sm:$0xff]
    %v490 = vld [vmem:[#allocation5 + $0x110] sm:$0xff]
    %v491 = vld [vmem:[#allocation5 + $0x118] sm:$0xff]
    %v492 = vld [vmem:[#allocation5 + $0x120] sm:$0xff]
    %v493 = vld [vmem:[#allocation5 + $0x128] sm:$0xff]
    %v494 = vld [vmem:[#allocation5 + $0x130] sm:$0xff]
    %v495 = vld [vmem:[#allocation5 + $0x138] sm:$0xff]
    %v496 = vld [vmem:[#allocation5 + $0x140] sm:$0xff]
    %v497 = vld [vmem:[#allocation5 + $0x148] sm:$0xff]
    %v498 = vld [vmem:[#allocation5 + $0x150] sm:$0xff]
    %v499 = vld [vmem:[#allocation5 + $0x158] sm:$0xff]
    %v500 = vld [vmem:[#allocation5 + $0x160] sm:$0xff]
    %v501 = vld [vmem:[#allocation5 + $0x168] sm:$0xff]
    %v502 = vld [vmem:[#allocation5 + $0x170] sm:$0xff]
    %v503 = vld [vmem:[#allocation5 + $0x178] sm:$0xff]
    %v504 = vld [vmem:[#allocation5 + $0x180] sm:$0xff]
    %v505 = vld [vmem:[#allocation5 + $0x188] sm:$0xff]
    %v506 = vld [vmem:[#allocation5 + $0x190] sm:$0xff]
    %v507 = vld [vmem:[#allocation5 + $0x198] sm:$0xff]
    %v508 = vld [vmem:[#allocation5 + $0x1a0] sm:$0xff]
    %v509 = vld [vmem:[#allocation5 + $0x1a8] sm:$0xff]
    %v510 = vld [vmem:[#allocation5 + $0x1b0] sm:$0xff]
    %v511 = vld [vmem:[#allocation5 + $0x1b8] sm:$0xff]
    %v512 = vld [vmem:[#allocation5 + $0x1c0] sm:$0xff]
    %v513 = vld [vmem:[#allocation5 + $0x1c8] sm:$0xff]
    %v514 = vld [vmem:[#allocation5 + $0x1d0] sm:$0xff]
    %v515 = vld [vmem:[#allocation5 + $0x1d8] sm:$0xff]
    %v516 = vld [vmem:[#allocation5 + $0x1e0] sm:$0xff]
    %v517 = vld [vmem:[#allocation5 + $0x1e8] sm:$0xff]
    %v518 = vld [vmem:[#allocation5 + $0x1f0] sm:$0xff]
    %v519 = vld [vmem:[#allocation5 + $0x1f8] sm:$0xff]
    %520 = vmatprep.subr.mxu0 %v457
    %521 = vmatpush1.msra.mxu0 %v456
    %522 = vmatprep.subr.mxu0 %v461
    %523 = vmatpush1.msra.mxu0 %v460
    %524 = vmatprep.subr.mxu0 %v465
    %525 = vmatpush1.msra.mxu0 %v464
    %526 = vmatprep.subr.mxu0 %v469
    %527 = vmatpush1.msra.mxu0 %v468
    %528 = vmatprep.subr.mxu0 %v473
    %529 = vmatpush1.msra.mxu0 %v472
    %530 = vmatprep.subr.mxu0 %v477
    %531 = vmatpush1.msra.mxu0 %v476
    %532 = vmatprep.subr.mxu0 %v481
    %533 = vmatpush1.msra.mxu0 %v480
    %534 = vmatprep.subr.mxu0 %v485
    %535 = vmatpush1.msra.mxu0 %v484
    %536 = vmatprep.subr.mxu0 %v489
    %537 = vmatpush1.msra.mxu0 %v488
    %538 = vmatprep.subr.mxu0 %v493
    %539 = vmatpush1.msra.mxu0 %v492
    %540 = vmatprep.subr.mxu0 %v497
    %541 = vmatpush1.msra.mxu0 %v496
    %542 = vmatprep.subr.mxu0 %v501
    %543 = vmatpush1.msra.mxu0 %v500
    %544 = vmatprep.subr.mxu0 %v505
    %545 = vmatpush1.msra.mxu0 %v504
    %546 = vmatprep.subr.mxu0 %v509
    %547 = vmatpush1.msra.mxu0 %v508
    %548 = vmatprep.subr.mxu0 %v513
    %549 = vmatpush1.msra.mxu0 %v512
    %550 = vmatprep.subr.mxu0 %v517
    %551 = vmatpush1.msra.mxu0 %v516
    %552 = vmatprep.subr.mxu0 0.0
    %553 = vmatpush1.msra.mxu0 0.0
    %554 = vmatprep.subr.mxu0 0.0
    %555 = vmatpush1.msra.mxu0 0.0
    %556 = vmatprep.subr.mxu0 0.0
    %557 = vmatpush1.msra.mxu0 0.0
    %558 = vmatprep.subr.mxu0 0.0
    %559 = vmatpush1.msra.mxu0 0.0
    %560 = vmatprep.subr.mxu0 0.0
    %561 = vmatpush1.msra.mxu0 0.0
    %562 = vmatprep.subr.mxu0 0.0
    %563 = vmatpush1.msra.mxu0 0.0
    %564 = vmatprep.subr.mxu0 0.0
    %565 = vmatpush1.msra.mxu0 0.0
    %566 = vmatprep.subr.mxu0 0.0
    %567 = vmatpush1.msra.mxu0 0.0
    %568 = vmatprep.subr.mxu0 0.0
    %569 = vmatpush1.msra.mxu0 0.0
    %570 = vmatprep.subr.mxu0 0.0
    %571 = vmatpush1.msra.mxu0 0.0
    %572 = vmatprep.subr.mxu0 0.0
    %573 = vmatpush1.msra.mxu0 0.0
    %574 = vmatprep.subr.mxu0 0.0
    %575 = vmatpush1.msra.mxu0 0.0
    %576 = vmatprep.subr.mxu0 0.0
    %577 = vmatpush1.msra.mxu0 0.0
    %578 = vmatprep.subr.mxu0 0.0
    %579 = vmatpush1.msra.mxu0 0.0
    %580 = vmatprep.subr.mxu0 0.0
    %581 = vmatpush1.msra.mxu0 0.0
    %582 = vmatprep.subr.mxu0 0.0
    %583 = vmatpush1.msra.mxu0 0.0
    %584 = vmatprep.mubr.f32.mxu0 0.0
    %585 = vmatmul.mubr.f32.gmra.mrb[0].mxu0 %v276
    %v586 = vpop.f32.mrb[0].mxu0
    %v587 = vadd.f32 0.0, %v586
    %v588 = vpop.f32.mrb[0].mxu0
    %v589 = vadd.f32 0.0, %v588
    %590 = vdwg.mxu0
    %591 = vmatprep.subr.mxu0 %v459
    %592 = vmatpush1.msra.mxu0 %v458
    %593 = vmatprep.subr.mxu0 %v463
    %594 = vmatpush1.msra.mxu0 %v462
    %595 = vmatprep.subr.mxu0 %v467
    %596 = vmatpush1.msra.mxu0 %v466
    %597 = vmatprep.subr.mxu0 %v471
    %598 = vmatpush1.msra.mxu0 %v470
    %599 = vmatprep.subr.mxu0 %v475
    %600 = vmatpush1.msra.mxu0 %v474
    %601 = vmatprep.subr.mxu0 %v479
    %602 = vmatpush1.msra.mxu0 %v478
    %603 = vmatprep.subr.mxu0 %v483
    %604 = vmatpush1.msra.mxu0 %v482
    %605 = vmatprep.subr.mxu0 %v487
    %606 = vmatpush1.msra.mxu0 %v486
    %607 = vmatprep.subr.mxu0 %v491
    %608 = vmatpush1.msra.mxu0 %v490
    %609 = vmatprep.subr.mxu0 %v495
    %610 = vmatpush1.msra.mxu0 %v494
    %611 = vmatprep.subr.mxu0 %v499
    %612 = vmatpush1.msra.mxu0 %v498
    %613 = vmatprep.subr.mxu0 %v503
    %614 = vmatpush1.msra.mxu0 %v502
    %615 = vmatprep.subr.mxu0 %v507
    %616 = vmatpush1.msra.mxu0 %v506
    %617 = vmatprep.subr.mxu0 %v511
    %618 = vmatpush1.msra.mxu0 %v510
    %619 = vmatprep.subr.mxu0 %v515
    %620 = vmatpush1.msra.mxu0 %v514
    %621 = vmatprep.subr.mxu0 %v519
    %622 = vmatpush1.msra.mxu0 %v518
    %623 = vmatprep.subr.mxu0 0.0
    %624 = vmatpush1.msra.mxu0 0.0
    %625 = vmatprep.subr.mxu0 0.0
    %626 = vmatpush1.msra.mxu0 0.0
    %627 = vmatprep.subr.mxu0 0.0
    %628 = vmatpush1.msra.mxu0 0.0
    %629 = vmatprep.subr.mxu0 0.0
    %630 = vmatpush1.msra.mxu0 0.0
    %631 = vmatprep.subr.mxu0 0.0
    %632 = vmatpush1.msra.mxu0 0.0
    %633 = vmatprep.subr.mxu0 0.0
    %634 = vmatpush1.msra.mxu0 0.0
    %635 = vmatprep.subr.mxu0 0.0
    %636 = vmatpush1.msra.mxu0 0.0
    %637 = vmatprep.subr.mxu0 0.0
    %638 = vmatpush1.msra.mxu0 0.0
    %639 = vmatprep.subr.mxu0 0.0
    %640 = vmatpush1.msra.mxu0 0.0
    %641 = vmatprep.subr.mxu0 0.0
    %642 = vmatpush1.msra.mxu0 0.0
    %643 = vmatprep.subr.mxu0 0.0
    %644 = vmatpush1.msra.mxu0 0.0
    %645 = vmatprep.subr.mxu0 0.0
    %646 = vmatpush1.msra.mxu0 0.0
    %647 = vmatprep.subr.mxu0 0.0
    %648 = vmatpush1.msra.mxu0 0.0
    %649 = vmatprep.subr.mxu0 0.0
    %650 = vmatpush1.msra.mxu0 0.0
    %651 = vmatprep.subr.mxu0 0.0
    %652 = vmatpush1.msra.mxu0 0.0
    %653 = vmatprep.subr.mxu0 0.0
    %654 = vmatpush1.msra.mxu0 0.0
    %655 = vmatprep.mubr.f32.mxu0 0.0
    %656 = vmatmul.mubr.f32.gmra.mrb[0].mxu0 %v276
    %v657 = vpop.f32.mrb[0].mxu0
    %v658 = vadd.f32 0.0, %v657
    %v659 = vpop.f32.mrb[0].mxu0
    %v660 = vadd.f32 0.0, %v659
    %661 = vdwg.mxu0
    %v662 = vadd.f32 %v452, %v587
    %v663 = vadd.f32 %v453, %v589
    %v664 = vadd.f32 %v454, %v658
    %v665 = vadd.f32 %v455, %v660
    %v666 = vmul.f32 %v662, 0.5
    %v667 = vtanh.pop %v666
    %v668 = vadd.f32 %v667, 1.0
    %v669 = vmul.f32 %v668, 0.5
    %v670 = vmul.f32 %v663, 0.5
    %v671 = vtanh.pop %v670
    %v672 = vadd.f32 %v671, 1.0
    %v673 = vmul.f32 %v672, 0.5
    %v674 = vtanh.pop %v664
    %v675 = vmul.f32 %v665, 0.5
    %v676 = vtanh.pop %v675
    %v677 = vadd.f32 %v676, 1.0
    %v678 = vmul.f32 %v677, 0.5
    %v679 = vmul.f32 %v673, %v277
    %v680 = vmul.f32 %v669, %v674
    %v681 = vadd.f32 %v679, %v680
    %v682 = vtanh.pop %v681
    %v683 = vmul.f32 %v678, %v682
    %v684 = vld [vmem:[#allocation7] sm:$0xff]
    %v685 = vld [vmem:[#allocation7 + $0x8] sm:$0xff]
    %v686 = vld [vmem:[#allocation7 + $0x10] sm:$0xff]
    %v687 = vld [vmem:[#allocation7 + $0x18] sm:$0xff]
    %v688 = vld [vmem:[#allocation7 + $0x20] sm:$0xff]
    %v689 = vld [vmem:[#allocation7 + $0x28] sm:$0xff]
    %v690 = vld [vmem:[#allocation7 + $0x30] sm:$0xff]
    %v691 = vld [vmem:[#allocation7 + $0x38] sm:$0xff]
    %v692 = vld [vmem:[#allocation7 + $0x40] sm:$0xff]
    %v693 = vld [vmem:[#allocation7 + $0x48] sm:$0xff]
    %v694 = vld [vmem:[#allocation7 + $0x50] sm:$0xff]
    %v695 = vld [vmem:[#allocation7 + $0x58] sm:$0xff]
    %v696 = vld [vmem:[#allocation7 + $0x60] sm:$0xff]
    %v697 = vld [vmem:[#allocation7 + $0x68] sm:$0xff]
    %v698 = vld [vmem:[#allocation7 + $0x70] sm:$0xff]
    %v699 = vld [vmem:[#allocation7 + $0x78] sm:$0xff]
    %v700 = vld [vmem:[#allocation7 + $0x80] sm:$0xff]
    %v701 = vld [vmem:[#allocation7 + $0x88] sm:$0xff]
    %v702 = vld [vmem:[#allocation7 + $0x90] sm:$0xff]
    %v703 = vld [vmem:[#allocation7 + $0x98] sm:$0xff]
    %v704 = vld [vmem:[#allocation7 + $0xa0] sm:$0xff]
    %v705 = vld [vmem:[#allocation7 + $0xa8] sm:$0xff]
    %v706 = vld [vmem:[#allocation7 + $0xb0] sm:$0xff]
    %v707 = vld [vmem:[#allocation7 + $0xb8] sm:$0xff]
    %v708 = vld [vmem:[#allocation7 + $0xc0] sm:$0xff]
    %v709 = vld [vmem:[#allocation7 + $0xc8] sm:$0xff]
    %v710 = vld [vmem:[#allocation7 + $0xd0] sm:$0xff]
    %v711 = vld [vmem:[#allocation7 + $0xd8] sm:$0xff]
    %v712 = vld [vmem:[#allocation7 + $0xe0] sm:$0xff]
    %v713 = vld [vmem:[#allocation7 + $0xe8] sm:$0xff]
    %v714 = vld [vmem:[#allocation7 + $0xf0] sm:$0xff]
    %v715 = vld [vmem:[#allocation7 + $0xf8] sm:$0xff]
    %v716 = vld [vmem:[#allocation7 + $0x100] sm:$0xff]
    %v717 = vld [vmem:[#allocation7 + $0x108] sm:$0xff]
    %v718 = vld [vmem:[#allocation7 + $0x110] sm:$0xff]
    %v719 = vld [vmem:[#allocation7 + $0x118] sm:$0xff]
    %v720 = vld [vmem:[#allocation7 + $0x120] sm:$0xff]
    %v721 = vld [vmem:[#allocation7 + $0x128] sm:$0xff]
    %v722 = vld [vmem:[#allocation7 + $0x130] sm:$0xff]
    %v723 = vld [vmem:[#allocation7 + $0x138] sm:$0xff]
    %v724 = vld [vmem:[#allocation7 + $0x140] sm:$0xff]
    %v725 = vld [vmem:[#allocation7 + $0x148] sm:$0xff]
    %v726 = vld [vmem:[#allocation7 + $0x150] sm:$0xff]
    %v727 = vld [vmem:[#allocation7 + $0x158] sm:$0xff]
    %v728 = vld [vmem:[#allocation7 + $0x160] sm:$0xff]
    %v729 = vld [vmem:[#allocation7 + $0x168] sm:$0xff]
    %v730 = vld [vmem:[#allocation7 + $0x170] sm:$0xff]
    %v731 = vld [vmem:[#allocation7 + $0x178] sm:$0xff]
    %v732 = vld [vmem:[#allocation7 + $0x180] sm:$0xff]
    %v733 = vld [vmem:[#allocation7 + $0x188] sm:$0xff]
    %v734 = vld [vmem:[#allocation7 + $0x190] sm:$0xff]
    %v735 = vld [vmem:[#allocation7 + $0x198] sm:$0xff]
    %v736 = vld [vmem:[#allocation7 + $0x1a0] sm:$0xff]
    %v737 = vld [vmem:[#allocation7 + $0x1a8] sm:$0xff]
    %v738 = vld [vmem:[#allocation7 + $0x1b0] sm:$0xff]
    %v739 = vld [vmem:[#allocation7 + $0x1b8] sm:$0xff]
    %v740 = vld [vmem:[#allocation7 + $0x1c0] sm:$0xff]
    %v741 = vld [vmem:[#allocation7 + $0x1c8] sm:$0xff]
    %v742 = vld [vmem:[#allocation7 + $0x1d0] sm:$0xff]
    %v743 = vld [vmem:[#allocation7 + $0x1d8] sm:$0xff]
    %v744 = vld [vmem:[#allocation7 + $0x1e0] sm:$0xff]
    %v745 = vld [vmem:[#allocation7 + $0x1e8] sm:$0xff]
    %v746 = vld [vmem:[#allocation7 + $0x1f0] sm:$0xff]
    %v747 = vld [vmem:[#allocation7 + $0x1f8] sm:$0xff]
    %v748 = vld [vmem:[#allocation7 + $0x200] sm:$0xff]
    %v749 = vld [vmem:[#allocation7 + $0x208] sm:$0xff]
    %v750 = vld [vmem:[#allocation7 + $0x210] sm:$0xff]
    %v751 = vld [vmem:[#allocation7 + $0x218] sm:$0xff]
    %v752 = vld [vmem:[#allocation7 + $0x220] sm:$0xff]
    %v753 = vld [vmem:[#allocation7 + $0x228] sm:$0xff]
    %v754 = vld [vmem:[#allocation7 + $0x230] sm:$0xff]
    %v755 = vld [vmem:[#allocation7 + $0x238] sm:$0xff]
    %v756 = vld [vmem:[#allocation7 + $0x240] sm:$0xff]
    %v757 = vld [vmem:[#allocation7 + $0x248] sm:$0xff]
    %v758 = vld [vmem:[#allocation7 + $0x250] sm:$0xff]
    %v759 = vld [vmem:[#allocation7 + $0x258] sm:$0xff]
    %v760 = vld [vmem:[#allocation7 + $0x260] sm:$0xff]
    %v761 = vld [vmem:[#allocation7 + $0x268] sm:$0xff]
    %v762 = vld [vmem:[#allocation7 + $0x270] sm:$0xff]
    %v763 = vld [vmem:[#allocation7 + $0x278] sm:$0xff]
    %v764 = vld [vmem:[%s10] sm:$0x1f]
    %v766 = vlaneseq
    %v767 = vshrl.u32 %v766, 7
    %v768 = vsub.s32 0, %v767
    %v769 = vrot.slane %v764, %v768
    %v770 = vlaneseq
    %v771 = vshrl.u32 %v770, 7
    %v772 = vsub.s32 1, %v771
    %v773 = vrot.slane %v764, %v772
    %v774 = vlaneseq
    %v775 = vshrl.u32 %v774, 7
    %v776 = vsub.s32 2, %v775
    %v777 = vrot.slane %v764, %v776
    %v778 = vlaneseq
    %v779 = vshrl.u32 %v778, 7
    %v780 = vsub.s32 3, %v779
    %v781 = vrot.slane %v764, %v780
    %v782 = vlaneseq
    %v783 = vshrl.u32 %v782, 7
    %v784 = vsub.s32 4, %v783
    %v785 = vrot.slane %v764, %v784
    %791 = vmatprep.subr.mxu0 %v685
    %792 = vmatpush1.msra.mxu0 %v684
    %793 = vmatprep.subr.mxu0 %v690
    %794 = vmatpush1.msra.mxu0 %v689
    %795 = vmatprep.subr.mxu0 %v695
    %796 = vmatpush1.msra.mxu0 %v694
    %797 = vmatprep.subr.mxu0 %v700
    %798 = vmatpush1.msra.mxu0 %v699
    %799 = vmatprep.subr.mxu0 %v705
    %800 = vmatpush1.msra.mxu0 %v704
    %801 = vmatprep.subr.mxu0 %v710
    %802 = vmatpush1.msra.mxu0 %v709
    %803 = vmatprep.subr.mxu0 %v715
    %804 = vmatpush1.msra.mxu0 %v714
    %805 = vmatprep.subr.mxu0 %v720
    %806 = vmatpush1.msra.mxu0 %v719
    %807 = vmatprep.subr.mxu0 %v725
    %808 = vmatpush1.msra.mxu0 %v724
    %809 = vmatprep.subr.mxu0 %v730
    %810 = vmatpush1.msra.mxu0 %v729
    %811 = vmatprep.subr.mxu0 %v735
    %812 = vmatpush1.msra.mxu0 %v734
    %813 = vmatprep.subr.mxu0 %v740
    %814 = vmatpush1.msra.mxu0 %v739
    %815 = vmatprep.subr.mxu0 %v745
    %816 = vmatpush1.msra.mxu0 %v744
    %817 = vmatprep.subr.mxu0 %v750
    %818 = vmatpush1.msra.mxu0 %v749
    %819 = vmatprep.subr.mxu0 %v755
    %820 = vmatpush1.msra.mxu0 %v754
    %821 = vmatprep.subr.mxu0 %v760
    %822 = vmatpush1.msra.mxu0 %v759
    %823 = vmatprep.subr.mxu0 0.0
    %824 = vmatpush1.msra.mxu0 0.0
    %825 = vmatprep.subr.mxu0 0.0
    %826 = vmatpush1.msra.mxu0 0.0
    %827 = vmatprep.subr.mxu0 0.0
    %828 = vmatpush1.msra.mxu0 0.0
    %829 = vmatprep.subr.mxu0 0.0
    %830 = vmatpush1.msra.mxu0 0.0
    %831 = vmatprep.subr.mxu0 0.0
    %832 = vmatpush1.msra.mxu0 0.0
    %833 = vmatprep.subr.mxu0 0.0
    %834 = vmatpush1.msra.mxu0 0.0
    %835 = vmatprep.subr.mxu0 0.0
    %836 = vmatpush1.msra.mxu0 0.0
    %837 = vmatprep.subr.mxu0 0.0
    %838 = vmatpush1.msra.mxu0 0.0
    %839 = vmatprep.subr.mxu0 0.0
    %840 = vmatpush1.msra.mxu0 0.0
    %841 = vmatprep.subr.mxu0 0.0
    %842 = vmatpush1.msra.mxu0 0.0
    %843 = vmatprep.subr.mxu0 0.0
    %844 = vmatpush1.msra.mxu0 0.0
    %845 = vmatprep.subr.mxu0 0.0
    %846 = vmatpush1.msra.mxu0 0.0
    %847 = vmatprep.subr.mxu0 0.0
    %848 = vmatpush1.msra.mxu0 0.0
    %849 = vmatprep.subr.mxu0 0.0
    %850 = vmatpush1.msra.mxu0 0.0
    %851 = vmatprep.subr.mxu0 0.0
    %852 = vmatpush1.msra.mxu0 0.0
    %853 = vmatprep.subr.mxu0 0.0
    %854 = vmatpush1.msra.mxu0 0.0
    %855 = vmatprep.mubr.f32.mxu0 0.0
    %856 = vmatmul.mubr.f32.gmra.mrb[0].mxu0 %v683
    %v857 = vpop.f32.mrb[0].mxu0
    %v858 = vadd.f32 %v769, %v857
    %v859 = vpop.f32.mrb[0].mxu0
    %v860 = vadd.f32 %v773, %v859
    %861 = vdwg.mxu0
    %862 = vmatprep.subr.mxu0 %v687
    %863 = vmatpush1.msra.mxu0 %v686
    %864 = vmatprep.subr.mxu0 %v692
    %865 = vmatpush1.msra.mxu0 %v691
    %866 = vmatprep.subr.mxu0 %v697
    %867 = vmatpush1.msra.mxu0 %v696
    %868 = vmatprep.subr.mxu0 %v702
    %869 = vmatpush1.msra.mxu0 %v701
    %870 = vmatprep.subr.mxu0 %v707
    %871 = vmatpush1.msra.mxu0 %v706
    %872 = vmatprep.subr.mxu0 %v712
    %873 = vmatpush1.msra.mxu0 %v711
    %874 = vmatprep.subr.mxu0 %v717
    %875 = vmatpush1.msra.mxu0 %v716
    %876 = vmatprep.subr.mxu0 %v722
    %877 = vmatpush1.msra.mxu0 %v721
    %878 = vmatprep.subr.mxu0 %v727
    %879 = vmatpush1.msra.mxu0 %v726
    %880 = vmatprep.subr.mxu0 %v732
    %881 = vmatpush1.msra.mxu0 %v731
    %882 = vmatprep.subr.mxu0 %v737
    %883 = vmatpush1.msra.mxu0 %v736
    %884 = vmatprep.subr.mxu0 %v742
    %885 = vmatpush1.msra.mxu0 %v741
    %886 = vmatprep.subr.mxu0 %v747
    %887 = vmatpush1.msra.mxu0 %v746
    %888 = vmatprep.subr.mxu0 %v752
    %889 = vmatpush1.msra.mxu0 %v751
    %890 = vmatprep.subr.mxu0 %v757
    %891 = vmatpush1.msra.mxu0 %v756
    %892 = vmatprep.subr.mxu0 %v762
    %893 = vmatpush1.msra.mxu0 %v761
    %894 = vmatprep.subr.mxu0 0.0
    %895 = vmatpush1.msra.mxu0 0.0
    %896 = vmatprep.subr.mxu0 0.0
    %897 = vmatpush1.msra.mxu0 0.0
    %898 = vmatprep.subr.mxu0 0.0
    %899 = vmatpush1.msra.mxu0 0.0
    %900 = vmatprep.subr.mxu0 0.0
    %901 = vmatpush1.msra.mxu0 0.0
    %902 = vmatprep.subr.mxu0 0.0
    %903 = vmatpush1.msra.mxu0 0.0
    %904 = vmatprep.subr.mxu0 0.0
    %905 = vmatpush1.msra.mxu0 0.0
    %906 = vmatprep.subr.mxu0 0.0
    %907 = vmatpush1.msra.mxu0 0.0
    %908 = vmatprep.subr.mxu0 0.0
    %909 = vmatpush1.msra.mxu0 0.0
    %910 = vmatprep.subr.mxu0 0.0
    %911 = vmatpush1.msra.mxu0 0.0
    %912 = vmatprep.subr.mxu0 0.0
    %913 = vmatpush1.msra.mxu0 0.0
    %914 = vmatprep.subr.mxu0 0.0
    %915 = vmatpush1.msra.mxu0 0.0
    %916 = vmatprep.subr.mxu0 0.0
    %917 = vmatpush1.msra.mxu0 0.0
    %918 = vmatprep.subr.mxu0 0.0
    %919 = vmatpush1.msra.mxu0 0.0
    %920 = vmatprep.subr.mxu0 0.0
    %921 = vmatpush1.msra.mxu0 0.0
    %922 = vmatprep.subr.mxu0 0.0
    %923 = vmatpush1.msra.mxu0 0.0
    %924 = vmatprep.subr.mxu0 0.0
    %925 = vmatpush1.msra.mxu0 0.0
    %926 = vmatprep.mubr.f32.mxu0 0.0
    %927 = vmatmul.mubr.f32.gmra.mrb[0].mxu0 %v683
    %v928 = vpop.f32.mrb[0].mxu0
    %v929 = vadd.f32 %v777, %v928
    %v930 = vpop.f32.mrb[0].mxu0
    %v931 = vadd.f32 %v781, %v930
    %932 = vdwg.mxu0
    %933 = vmatprep.subr.mxu0 0.0
    %934 = vmatpush1.msra.mxu0 %v688
    %935 = vmatprep.subr.mxu0 0.0
    %936 = vmatpush1.msra.mxu0 %v693
    %937 = vmatprep.subr.mxu0 0.0
    %938 = vmatpush1.msra.mxu0 %v698
    %939 = vmatprep.subr.mxu0 0.0
    %940 = vmatpush1.msra.mxu0 %v703
    %941 = vmatprep.subr.mxu0 0.0
    %942 = vmatpush1.msra.mxu0 %v708
    %943 = vmatprep.subr.mxu0 0.0
    %944 = vmatpush1.msra.mxu0 %v713
    %945 = vmatprep.subr.mxu0 0.0
    %946 = vmatpush1.msra.mxu0 %v718
    %947 = vmatprep.subr.mxu0 0.0
    %948 = vmatpush1.msra.mxu0 %v723
    %949 = vmatprep.subr.mxu0 0.0
    %950 = vmatpush1.msra.mxu0 %v728
    %951 = vmatprep.subr.mxu0 0.0
    %952 = vmatpush1.msra.mxu0 %v733
    %953 = vmatprep.subr.mxu0 0.0
    %954 = vmatpush1.msra.mxu0 %v738
    %955 = vmatprep.subr.mxu0 0.0
    %956 = vmatpush1.msra.mxu0 %v743
    %957 = vmatprep.subr.mxu0 0.0
    %958 = vmatpush1.msra.mxu0 %v748
    %959 = vmatprep.subr.mxu0 0.0
    %960 = vmatpush1.msra.mxu0 %v753
    %961 = vmatprep.subr.mxu0 0.0
    %962 = vmatpush1.msra.mxu0 %v758
    %963 = vmatprep.subr.mxu0 0.0
    %964 = vmatpush1.msra.mxu0 %v763
    %965 = vmatprep.subr.mxu0 0.0
    %966 = vmatpush1.msra.mxu0 0.0
    %967 = vmatprep.subr.mxu0 0.0
    %968 = vmatpush1.msra.mxu0 0.0
    %969 = vmatprep.subr.mxu0 0.0
    %970 = vmatpush1.msra.mxu0 0.0
    %971 = vmatprep.subr.mxu0 0.0
    %972 = vmatpush1.msra.mxu0 0.0
    %973 = vmatprep.subr.mxu0 0.0
    %974 = vmatpush1.msra.mxu0 0.0
    %975 = vmatprep.subr.mxu0 0.0
    %976 = vmatpush1.msra.mxu0 0.0
    %977 = vmatprep.subr.mxu0 0.0
    %978 = vmatpush1.msra.mxu0 0.0
    %979 = vmatprep.subr.mxu0 0.0
    %980 = vmatpush1.msra.mxu0 0.0
    %981 = vmatprep.subr.mxu0 0.0
    %982 = vmatpush1.msra.mxu0 0.0
    %983 = vmatprep.subr.mxu0 0.0
    %984 = vmatpush1.msra.mxu0 0.0
    %985 = vmatprep.subr.mxu0 0.0
    %986 = vmatpush1.msra.mxu0 0.0
    %987 = vmatprep.subr.mxu0 0.0
    %988 = vmatpush1.msra.mxu0 0.0
    %989 = vmatprep.subr.mxu0 0.0
    %990 = vmatpush1.msra.mxu0 0.0
    %991 = vmatprep.subr.mxu0 0.0
    %992 = vmatpush1.msra.mxu0 0.0
    %993 = vmatprep.subr.mxu0 0.0
    %994 = vmatpush1.msra.mxu0 0.0
    %995 = vmatprep.subr.mxu0 0.0
    %996 = vmatpush1.msra.mxu0 0.0
    %997 = vmatprep.mubr.f32.mxu0 0.0
    %998 = vmatmul.mubr.f32.gmra.mrb[0].mxu0 %v683
    %v999 = vpop.f32.mrb[0].mxu0
    %v1000 = vadd.f32 %v785, %v999
    %v1001 = vpop.f32.mrb[0].mxu0
    %1002 = vdwg.mxu0
    %v1003 = vmul.f32 %v858, 0.5
    %v1004 = vtanh.pop %v1003
    %v1005 = vadd.f32 %v1004, 1.0
    %v1006 = vmul.f32 %v1005, 0.5
    %v1007 = vtanh.pop %v860
    %v1008 = vmax.f32 %v929, 0.0
    %v1009 = vand.u32 2147483647, %v929
    %v1010 = vsub.f32 0.0, %v1009
    %v1011 = vmul.f32 %v1010, 1.442695
    %v1012 = vpow.pop %v1011
    %v1013 = vadd.f32 %v1012, 1.0
    %v1014 = vlog2.pop %v1013
    %v1015 = vmul.f32 %v1014, 0.6931472
    %v1016 = vadd.f32 %v1008, %v1015
    %v1017 = vadd.f32 %v1016, 1e-08
    %v1018 = vmul.f32 %v931, 0.5
    %v1019 = vtanh.pop %v1018
    %v1020 = vadd.f32 %v1019, 1.0
    %v1021 = vmul.f32 %v1020, 0.5
    %v1022 = vtanh.pop %v1000
    %v1023 = vmul.f32 %v1007, %v1007
    %vm1024 = vcmask 155648
    %v1025 = vsel %vm1024, %v1023, 0.0
    %1026 = vadd.xlane.f32.xlu0 %v1025
    %v1027 = vpop.xlane.xlu0 %1026
    %v1028 = vadd.f32 %v1027, 1e-16
    %v1029 = vrsqrt.pop %v1028
    %v1030 = vmul.f32 %v1007, %v1029
    %v1031 = vmul.f32 %v278, %v278
    %v1032 = vmul.f32 %v279, %v279
    %v1033 = vmul.f32 %v280, %v280
    %v1034 = vadd.f32 %v1031, %v1032
    %v1035 = vsel %vm297, %v1033, 0.0
    %v1036 = vadd.f32 %v1034, %v1035
    %v1037 = vrot.slane %v1036, 4
    %v1038 = vadd.f32 %v1036, %v1037
    %v1039 = vrot.slane %v1038, 2
    %v1040 = vadd.f32 %v1038, %v1039
    %v1041 = vrot.slane %v1040, 1
    %v1042 = vadd.f32 %v1040, %v1041
    %v1043 = vadd.f32 %v1042, 1e-16
    %v1044 = vrsqrt.pop %v1043
    %v1046 = vsel %vm293, %v1030, 0
    %v1049 = vsel %vm297, %v280, 0
    %1051 = vmatprep.subr.mxu0 0.0
    %1052 = vmatpush1.msra.mxu0 %v278
    %1053 = vmatprep.subr.mxu0 0.0
    %1054 = vmatpush1.msra.mxu0 %v279
    %1055 = vmatprep.subr.mxu0 0.0
    %1056 = vmatpush1.msra.mxu0 %v1049
    %1057 = vmatprep.subr.mxu0 0.0
    %1058 = vmatpush1.msra.mxu0 0.0
    %1059 = vmatprep.subr.mxu0 0.0
    %1060 = vmatpush1.msra.mxu0 0.0
    %1061 = vmatprep.subr.mxu0 0.0
    %1062 = vmatpush1.msra.mxu0 0.0
    %1063 = vmatprep.subr.mxu0 0.0
    %1064 = vmatpush1.msra.mxu0 0.0
    %1065 = vmatprep.subr.mxu0 0.0
    %1066 = vmatpush1.msra.mxu0 0.0
    %1067 = vmatprep.subr.mxu0 0.0
    %1068 = vmatpush1.msra.mxu0 0.0
    %1069 = vmatprep.subr.mxu0 0.0
    %1070 = vmatpush1.msra.mxu0 0.0
    %1071 = vmatprep.subr.mxu0 0.0
    %1072 = vmatpush1.msra.mxu0 0.0
    %1073 = vmatprep.subr.mxu0 0.0
    %1074 = vmatpush1.msra.mxu0 0.0
    %1075 = vmatprep.subr.mxu0 0.0
    %1076 = vmatpush1.msra.mxu0 0.0
    %1077 = vmatprep.subr.mxu0 0.0
    %1078 = vmatpush1.msra.mxu0 0.0
    %1079 = vmatprep.subr.mxu0 0.0
    %1080 = vmatpush1.msra.mxu0 0.0
    %1081 = vmatprep.subr.mxu0 0.0
    %1082 = vmatpush1.msra.mxu0 0.0
    %1083 = vmatprep.subr.mxu0 0.0
    %1084 = vmatpush1.msra.mxu0 0.0
    %1085 = vmatprep.subr.mxu0 0.0
    %1086 = vmatpush1.msra.mxu0 0.0
    %1087 = vmatprep.subr.mxu0 0.0
    %1088 = vmatpush1.msra.mxu0 0.0
    %1089 = vmatprep.subr.mxu0 0.0
    %1090 = vmatpush1.msra.mxu0 0.0
    %1091 = vmatprep.subr.mxu0 0.0
    %1092 = vmatpush1.msra.mxu0 0.0
    %1093 = vmatprep.subr.mxu0 0.0
    %1094 = vmatpush1.msra.mxu0 0.0
    %1095 = vmatprep.subr.mxu0 0.0
    %1096 = vmatpush1.msra.mxu0 0.0
    %1097 = vmatprep.subr.mxu0 0.0
    %1098 = vmatpush1.msra.mxu0 0.0
    %1099 = vmatprep.subr.mxu0 0.0
    %1100 = vmatpush1.msra.mxu0 0.0
    %1101 = vmatprep.subr.mxu0 0.0
    %1102 = vmatpush1.msra.mxu0 0.0
    %1103 = vmatprep.subr.mxu0 0.0
    %1104 = vmatpush1.msra.mxu0 0.0
    %1105 = vmatprep.subr.mxu0 0.0
    %1106 = vmatpush1.msra.mxu0 0.0
    %1107 = vmatprep.subr.mxu0 0.0
    %1108 = vmatpush1.msra.mxu0 0.0
    %1109 = vmatprep.subr.mxu0 0.0
    %1110 = vmatpush1.msra.mxu0 0.0
    %1111 = vmatprep.subr.mxu0 0.0
    %1112 = vmatpush1.msra.mxu0 0.0
    %1113 = vmatprep.subr.mxu0 0.0
    %1114 = vmatpush1.msra.mxu0 0.0
    %1115 = vmatprep.mubr.f32.mxu0 0.0
    %1116 = vmatmul.mubr.f32.gmra.mrb[0].mxu0 %v1046
    %v1117 = vpop.f32.mrb[0].mxu0
    %v1118 = vadd.f32 0.0, %v1117
    %v1119 = vpop.f32.mrb[0].mxu0
    %1120 = vdwg.mxu0
    %v1121 = vmul.f32 %v1118, %v1044
    %1123 = vset.pattern.permute.xlu0 0
    %1124 = vperm.xlu0 %1123, %v1017
    %v1125 = vpop.permute.xlu0 %1124
    %v1127 = vmul.f32 %v1125, %v1121
    %vm1128 = vcmask 1040384
    %v1129 = vsel %vm1128, %v1127, -inf
    %1130 = vmax.xlane.f32.xlu0 %v1129
    %v1131 = vpop.xlane.xlu0 %1130
    %v1132 = vsub.f32 %v1127, %v1131
    %v1133 = vmul.f32 %v1132, 1.442695
    %v1134 = vpow.pop %v1133
    %v1135 = vsel %vm1128, %v1134, 0.0
    %1136 = vadd.xlane.f32.xlu0 %v1135
    %v1137 = vpop.xlane.xlu0 %1136
    %v1138 = vrcp.pop %v1137
    %v1139 = vmul.f32 %v1134, %v1138
    %v1140 = vlaneseq
    %v1141 = vshrl.u32 %v1140, 7
    %v1142 = vsub.s32 0, %v1141
    %v1143 = vrot.slane %v1021, %v1142
    %v1144 = vmul.f32 %v272, %v1143
    %v1145 = vmul.f32 %v273, %v1143
    %v1146 = vmul.f32 %v274, %v1143
    %v1147 = vsel %vm293, %v1144, 0.0
    %1148 = vadd.xlane.f32.xlu0 %v1147
    %v1149 = vpop.xlane.xlu0 %1148
    %v1150 = vsel %vm293, %v1145, 0.0
    %1151 = vadd.xlane.f32.xlu0 %v1150
    %v1152 = vpop.xlane.xlu0 %1151
    %vm1153 = vcmask 158720
    %v1154 = vsel %vm1153, %v1146, 0.0
    %1155 = vadd.xlane.f32.xlu0 %v1154
    %v1156 = vpop.xlane.xlu0 %1155
    %v1157 = vlaneseq
    %v1158 = vshrl.u32 %v1157, 7
    %v1159 = vsub.s32 0, %v1158
    %v1160 = vrot.slane %v1022, %v1159
    %v1161 = vmul.f32 %v272, %v1160
    %v1162 = vmul.f32 %v273, %v1160
    %v1163 = vmul.f32 %v274, %v1160
    %v1164 = vsel %vm293, %v1161, 0.0
    %1165 = vadd.xlane.f32.xlu0 %v1164
    %v1166 = vpop.xlane.xlu0 %1165
    %v1167 = vsel %vm293, %v1162, 0.0
    %1168 = vadd.xlane.f32.xlu0 %v1167
    %v1169 = vpop.xlane.xlu0 %1168
    %v1170 = vsel %vm1153, %v1163, 0.0
    %1171 = vadd.xlane.f32.xlu0 %v1170
    %v1172 = vpop.xlane.xlu0 %1171
    %v1173 = vlaneseq
    %v1174 = vshrl.u32 %v1173, 7
    %v1175 = vsub.s32 0, %v1174
    %v1176 = vrot.slane %v1139, %v1175
    %v1177 = vmul.f32 %v1149, %v1176
    %v1178 = vmul.f32 %v1152, %v1176
    %v1179 = vmul.f32 %v1156, %v1176
    %v1180 = vsub.f32 1.0, %v1177
    %v1181 = vsub.f32 1.0, %v1178
    %v1182 = vsub.f32 1.0, %v1179
    %v1183 = vmul.f32 %v278, %v1180
    %v1184 = vmul.f32 %v279, %v1181
    %v1185 = vmul.f32 %v280, %v1182
    %v1186 = vmul.f32 %v1166, %v1176
    %v1187 = vmul.f32 %v1169, %v1176
    %v1188 = vmul.f32 %v1172, %v1176
    %v1189 = vadd.f32 %v1183, %v1186
    %v1190 = vadd.f32 %v1184, %v1187
    %v1191 = vadd.f32 %v1185, %v1188
    %1192 = vmatprep.subr.mxu0 0.0
    %1193 = vmatpush1.xpose.msra.mxu0 %v1189
    %1194 = vmatprep.subr.mxu0 0.0
    %1195 = vmatpush1.xpose.msra.mxu0 %v1190
    %1196 = vmatprep.subr.mxu0 0.0
    %1197 = vmatpush1.xpose.msra.mxu0 %v1191
    %1198 = vmatprep.subr.mxu0 0.0
    %1199 = vmatpush1.xpose.msra.mxu0 0.0
    %1200 = vmatprep.subr.mxu0 0.0
    %1201 = vmatpush1.xpose.msra.mxu0 0.0
    %1202 = vmatprep.subr.mxu0 0.0
    %1203 = vmatpush1.xpose.msra.mxu0 0.0
    %1204 = vmatprep.subr.mxu0 0.0
    %1205 = vmatpush1.xpose.msra.mxu0 0.0
    %1206 = vmatprep.subr.mxu0 0.0
    %1207 = vmatpush1.xpose.msra.mxu0 0.0
    %1208 = vmatprep.subr.mxu0 0.0
    %1209 = vmatpush1.xpose.msra.mxu0 0.0
    %1210 = vmatprep.subr.mxu0 0.0
    %1211 = vmatpush1.xpose.msra.mxu0 0.0
    %1212 = vmatprep.subr.mxu0 0.0
    %1213 = vmatpush1.xpose.msra.mxu0 0.0
    %1214 = vmatprep.subr.mxu0 0.0
    %1215 = vmatpush1.xpose.msra.mxu0 0.0
    %1216 = vmatprep.subr.mxu0 0.0
    %1217 = vmatpush1.xpose.msra.mxu0 0.0
    %1218 = vmatprep.subr.mxu0 0.0
    %1219 = vmatpush1.xpose.msra.mxu0 0.0
    %1220 = vmatprep.subr.mxu0 0.0
    %1221 = vmatpush1.xpose.msra.mxu0 0.0
    %1222 = vmatprep.subr.mxu0 0.0
    %1223 = vmatpush1.xpose.msra.mxu0 0.0
    %1224 = vmatprep.subr.mxu0 0.0
    %1225 = vmatpush1.xpose.msra.mxu0 0.0
    %1226 = vmatprep.subr.mxu0 0.0
    %1227 = vmatpush1.xpose.msra.mxu0 0.0
    %1228 = vmatprep.subr.mxu0 0.0
    %1229 = vmatpush1.xpose.msra.mxu0 0.0
    %1230 = vmatprep.subr.mxu0 0.0
    %1231 = vmatpush1.xpose.msra.mxu0 0.0
    %1232 = vmatprep.subr.mxu0 0.0
    %1233 = vmatpush1.xpose.msra.mxu0 0.0
    %1234 = vmatprep.subr.mxu0 0.0
    %1235 = vmatpush1.xpose.msra.mxu0 0.0
    %1236 = vmatprep.subr.mxu0 0.0
    %1237 = vmatpush1.xpose.msra.mxu0 0.0
    %1238 = vmatprep.subr.mxu0 0.0
    %1239 = vmatpush1.xpose.msra.mxu0 0.0
    %1240 = vmatprep.subr.mxu0 0.0
    %1241 = vmatpush1.xpose.msra.mxu0 0.0
    %1242 = vmatprep.subr.mxu0 0.0
    %1243 = vmatpush1.xpose.msra.mxu0 0.0
    %1244 = vmatprep.subr.mxu0 0.0
    %1245 = vmatpush1.xpose.msra.mxu0 0.0
    %1246 = vmatprep.subr.mxu0 0.0
    %1247 = vmatpush1.xpose.msra.mxu0 0.0
    %1248 = vmatprep.subr.mxu0 0.0
    %1249 = vmatpush1.xpose.msra.mxu0 0.0
    %1250 = vmatprep.subr.mxu0 0.0
    %1251 = vmatpush1.xpose.msra.mxu0 0.0
    %1252 = vmatprep.subr.mxu0 0.0
    %1253 = vmatpush1.xpose.msra.mxu0 0.0
    %1254 = vmatprep.subr.mxu0 0.0
    %1255 = vmatpush1.xpose.msra.mxu0 0.0
    %1256 = vmatprep.mubr.f32.mxu0 0.0
    %1257 = vmatmul.mubr.f32.gmra.mrb[0].mxu0 %v1139
    %v1258 = vpop.f32.mrb[0].mxu0
    %v1259 = vadd.f32 0.0, %v1258
    %v1260 = vpop.f32.mrb[0].mxu0
    %1261 = vdwg.mxu0
    %vm1262 = vcmask 57344
    %1263 = vst.msk [vmem:[#allocation8] sm:$0x1] %vm1262, %v1006
    %1264 = vst [vmem:[%s12] sm:$0x1] %v683
    %1265 = vst [vmem:[%s13] sm:$0x1] %v681
    %1266 = vst.msk [vmem:[#allocation9] sm:$0x1] %vm1024, %v1259
    %1267 = vst [vmem:[#allocation11] sm:$0x1] %v1139
    %1268 = vst [vmem:[%s16] sm:$0xff] %v1189
    %1269 = vst [vmem:[%s16 + $0x8] sm:$0xff] %v1190
    %1270 = vst [vmem:[%s16 + $0x10] sm:$0xf] %v1191
    // Predicated region
    $region58: #{ntm_forward.1} parent=1 // pred_check
      _
    $region59: #{ntm_forward.1} parent=1 // pred_check_branch
      %1272 = sbr.rel (0) target = $region61
    $region60: #{ntm_forward.1} parent=1 // pred_region
      %s1274 = ssub.s32 16, 16
      %1275 = vsyncadd [#allocation4], %s1274
      %s1277 = sshll.u32 [#allocation8], 4
      %s1278 = int_to_ptr.vmem [resolvable:$true] %s1277
      %1280 = dma.vmem_to_hbm [thread:$0]  %s1278, 16, %s11, [#allocation4]
    $region61: #{ntm_forward.1} parent=1 // pred_fallthru
      _
    // Predicated region
    $region62: #{ntm_forward.1} parent=1 // pred_check
      _
    $region63: #{ntm_forward.1} parent=1 // pred_check_branch
      %1282 = sbr.rel (0) target = $region65
    $region64: #{ntm_forward.1} parent=1 // pred_region
      _
    $region65: #{ntm_forward.1} parent=1 // pred_fallthru
      _
    // Predicated region
    $region66: #{ntm_forward.1} parent=1 // pred_check
      _
    $region67: #{ntm_forward.1} parent=1 // pred_check_branch
      %1284 = sbr.rel (0) target = $region69
    $region68: #{ntm_forward.1} parent=1 // pred_region
      _
    $region69: #{ntm_forward.1} parent=1 // pred_fallthru
      _
    // Predicated region
    $region70: #{ntm_forward.1} parent=1 // pred_check
      _
    $region71: #{ntm_forward.1} parent=1 // pred_check_branch
      %1286 = sbr.rel (0) target = $region73
    $region72: #{ntm_forward.1} parent=1 // pred_region
      %s1288 = ssub.s32 16, 16
      %1289 = vsyncadd [#allocation10], %s1288
      %s1291 = sshll.u32 [#allocation9], 4
      %s1292 = int_to_ptr.vmem [resolvable:$true] %s1291
      %1294 = dma.vmem_to_hbm [thread:$0]  %s1292, 16, %s14, [#allocation10]
    $region73: #{ntm_forward.1} parent=1 // pred_fallthru
      _
    // Predicated region
    $region74: #{ntm_forward.1} parent=1 // pred_check
      _
    $region75: #{ntm_forward.1} parent=1 // pred_check_branch
      %1296 = sbr.rel (0) target = $region77
    $region76: #{ntm_forward.1} parent=1 // pred_region
      %s1298 = ssub.s32 16, 16
      %1299 = vsyncadd [#allocation10], %s1298
      %s1301 = sshll.u32 [#allocation11], 4
      %s1302 = int_to_ptr.vmem [resolvable:$true] %s1301
      %1304 = dma.vmem_to_hbm [thread:$0]  %s1302, 16, %s15, [#allocation10]
    $region77: #{ntm_forward.1} parent=1 // pred_fallthru
      _
    // Predicated region
    $region78: #{ntm_forward.1} parent=1 // pred_check
      _
    $region79: #{ntm_forward.1} parent=1 // pred_check_branch
      %1306 = sbr.rel (0) target = $region81
    $region80: #{ntm_forward.1} parent=1 // pred_region
      _
    $region81: #{ntm_forward.1} parent=1 // pred_fallthru
      _
    // Predicated region
    $region82: #{ntm_forward.1} parent=1 // pred_check
      _
    $region83: #{ntm_forward.1} parent=1 // pred_check_branch
      %1308 = sbr.rel (0) target = $region85
    $region84: #{ntm_forward.1} parent=1 // pred_region
      %1309 = dma.done [#allocation4], 16
    $region85: #{ntm_forward.1} parent=1 // pred_fallthru
      _
    // Predicated region
    $region86: #{ntm_forward.1} parent=1 // pred_check
      _
    $region87: #{ntm_forward.1} parent=1 // pred_check_branch
      %1311 = sbr.rel (0) target = $region89
    $region88: #{ntm_forward.1} parent=1 // pred_region
      _
    $region89: #{ntm_forward.1} parent=1 // pred_fallthru
      _
    // Predicated region
    $region90: #{ntm_forward.1} parent=1 // pred_check
      _
    $region91: #{ntm_forward.1} parent=1 // pred_check_branch
      %1313 = sbr.rel (0) target = $region93
    $region92: #{ntm_forward.1} parent=1 // pred_region
      _
    $region93: #{ntm_forward.1} parent=1 // pred_fallthru
      _
    // Predicated region
    $region94: #{ntm_forward.1} parent=1 // pred_check
      _
    $region95: #{ntm_forward.1} parent=1 // pred_check_branch
      %1315 = sbr.rel (0) target = $region97
    $region96: #{ntm_forward.1} parent=1 // pred_region
      %1316 = dma.done [#allocation10], 16
    $region97: #{ntm_forward.1} parent=1 // pred_fallthru
      _
    // Predicated region
    $region98: #{ntm_forward.1} parent=1 // pred_check
      _
    $region99: #{ntm_forward.1} parent=1 // pred_check_branch
      %1318 = sbr.rel (0) target = $region101
    $region100: #{ntm_forward.1} parent=1 // pred_region
      %1319 = dma.done [#allocation10], 16
    $region101: #{ntm_forward.1} parent=1 // pred_fallthru
      _
    // Predicated region
    $region102: #{ntm_forward.1} parent=1 // pred_check
      _
    $region103: #{ntm_forward.1} parent=1 // pred_check_branch
      %1321 = sbr.rel (0) target = $region105
    $region104: #{ntm_forward.1} parent=1 // pred_region
      _
    $region105: #{ntm_forward.1} parent=1 // pred_fallthru
      _
    %1322 = vsyncpa [#allocation3], 1
    %1323 = vsyncpa [#allocation6], 1
    %1324 = vsyncpa [#allocation4], 1
    %1325 = vsyncpa [#allocation10], 1

</llo_original>
